<compile_context>
chip_gen: v6e
topology: v6e:2x2x1
jax: 0.10.0
libtpu: 0.0.40
codegen_flags: <defaults>
</compile_context>

<pallas_src>
import functools

import jax
import jax.numpy as jnp
from jax import lax
from jax.experimental import pallas as pl
from jax.experimental.pallas import tpu as pltpu


# ----------------------------------------------------------------------------
# Fused depthwise(3x3, dilated) + pointwise(1x1) kernel
# ----------------------------------------------------------------------------

def _dsconv_kernel(x_ref, wdw_ref, bdw_ref, wpw_ref, bpw_ref, o_ref,
                   *, kh, kw, dil, th, wo):
  """One (batch image, output-row tile) step.

  x_ref   : (1, Hp, Wp, Cin)   zero-padded NHWC input image (f32)
  wdw_ref : (kh*kw, 1, Cin)    per-channel depthwise tap weights (f32)
  bdw_ref : (1, Cin)           depthwise bias (f32)
  wpw_ref : (Cin, Cout)        pointwise weight (bf16, MXU operand)
  bpw_ref : (1, Cout)          pointwise bias (f32)
  o_ref   : (1, th, wo, Cout)  output tile (f32)
  """
  i = pl.program_id(1)          # output-row tile index within this image
  h0 = i * th
  cin = x_ref.shape[-1]

  # Depthwise: accumulate kh*kw shifted taps in f32 on the VPU. Taps are
  # shifted reads of the VMEM-resident padded block (no HBM tap stack).
  acc = jnp.zeros((th, wo, cin), jnp.float32)
  for ky in range(kh):
    for kx in range(kw):
      tap = x_ref[0, pl.ds(h0 + ky * dil, th), kx * dil:kx * dil + wo, :]
      acc = acc + tap * wdw_ref[ky * kw + kx]          # (th,wo,C) * (1,C)

  h2 = acc.reshape(th * wo, cin) + bdw_ref[...]        # add depthwise bias (f32)

  # Pointwise 1x1 conv == matmul on the MXU: bf16 operands, f32 accumulation,
  # bias + store epilogue in f32.
  y = jnp.dot(h2.astype(jnp.bfloat16), wpw_ref[...],
              preferred_element_type=jnp.float32)
  y = y + bpw_ref[...]
  o_ref[0] = y.reshape(th, wo, -1).astype(o_ref.dtype)


def _pick_tile_h(ho, wo, target_rows=512):
  """Largest divisor of Ho such that the tile has <= target_rows output pixels."""
  if ho * wo <= target_rows:
    return ho
  best = 1
  for cand in range(1, ho + 1):
    if ho % cand == 0 and cand * wo <= target_rows:
      best = cand
  return best


def _dsconv_pallas(x_pad, w_dw, b_dw, w_pw, b_pw, *, kh, kw, dil, ho, wo, th):
  b, hp, wp, cin = x_pad.shape
  cout = w_pw.shape[1]
  nht = ho // th
  kern = functools.partial(_dsconv_kernel, kh=kh, kw=kw, dil=dil, th=th, wo=wo)
  # TODO(synk): for very large spatial sizes the full padded image per block
  # would exceed VMEM; add W tiling (overlapping column windows) in that case.
  return pl.pallas_call(
      kern,
      out_shape=jax.ShapeDtypeStruct((b, ho, wo, cout), jnp.float32),
      grid=(b, nht),
      in_specs=[
          pl.BlockSpec((1, hp, wp, cin), lambda bi, hi: (bi, 0, 0, 0)),
          pl.BlockSpec((kh * kw, 1, cin), lambda bi, hi: (0, 0, 0)),
          pl.BlockSpec((1, cin), lambda bi, hi: (0, 0)),
          pl.BlockSpec((cin, cout), lambda bi, hi: (0, 0)),
          pl.BlockSpec((1, cout), lambda bi, hi: (0, 0)),
      ],
      out_specs=pl.BlockSpec((1, th, wo, cout), lambda bi, hi: (bi, hi, 0, 0)),
      compiler_params=pltpu.CompilerParams(
          dimension_semantics=("parallel", "arbitrary"),
          vmem_limit_bytes=32 * 1024 * 1024,
      ),
  )(x_pad, w_dw, b_dw, w_pw, b_pw)


@functools.partial(jax.jit, static_argnames=("dilation", "dw_padding"))
def dilated_dwsep_conv(x_nchw, w_dw, b_dw, w_pw, b_pw, *, dilation=1, dw_padding=1):
  """Forward pass of DilatedDepthwiseSeparableConv (NCHW in / NCHW out)."""
  b, c, h, w = x_nchw.shape
  cdw, _, kh, kw = w_dw.shape
  cout = w_pw.shape[0]
  assert cdw == c
  assert w_pw.shape[2] == 1 and w_pw.shape[3] == 1  # 1x1 pointwise (module default)
  d, p = int(dilation), int(dw_padding)

  # NCHW -> NHWC (channels on lanes) + zero padding  (plain-JAX glue).
  x = jnp.transpose(x_nchw, (0, 2, 3, 1)).astype(jnp.float32)
  x_pad = jnp.pad(x, ((0, 0), (p, p), (p, p), (0, 0)))
  hp, wp = h + 2 * p, w + 2 * p
  ho, wo = hp - d * (kh - 1), wp - d * (kw - 1)

  # Repack parameters for the kernel.
  w_dw_k = jnp.transpose(w_dw[:, 0], (1, 2, 0)).reshape(kh * kw, 1, c)
  w_dw_k = w_dw_k.astype(jnp.float32)                      # (taps, 1, C)
  b_dw_k = b_dw.reshape(1, c).astype(jnp.float32)
  w_pw_k = w_pw[:, :, 0, 0].T.astype(jnp.bfloat16)         # (C, Cout) bf16 MXU operand
  b_pw_k = b_pw.reshape(1, cout).astype(jnp.float32)

  th = _pick_tile_h(ho, wo)
  y = _dsconv_pallas(x_pad, w_dw_k, b_dw_k, w_pw_k, b_pw_k,
                     kh=kh, kw=kw, dil=d, ho=ho, wo=wo, th=th)
  return jnp.transpose(y, (0, 3, 1, 2))                    # NHWC -> NCHW


# ----------------------------------------------------------------------------
# Module wrapper (PyTorch-like parameter init) + pure-JAX reference
# ----------------------------------------------------------------------------

class DilatedDepthwiseSeparableConv:
  def __init__(self, key, n_channels, n_classes, dw_kernel_size=3, dw_padding=1,
               dilation=1, pw_kernel_size=1, pw_padding=0):
    # TODO(synk): pw_kernel_size != 1 / pw_padding != 0 (non-default) not ported.
    assert pw_kernel_size == 1 and pw_padding == 0
    self.dilation = int(dilation)
    self.dw_padding = int(dw_padding)
    k1, k2, k3, k4 = jax.random.split(key, 4)
    bd = (1.0 / (1 * dw_kernel_size * dw_kernel_size)) ** 0.5   # fan_in = ks*ks (groups=C)
    bp = (1.0 / n_channels) ** 0.5                               # fan_in = C (1x1)
    self.w_dw = jax.random.uniform(k1, (n_channels, 1, dw_kernel_size, dw_kernel_size),
                                   jnp.float32, -bd, bd)
    self.b_dw = jax.random.uniform(k2, (n_channels,), jnp.float32, -bd, bd)
    self.w_pw = jax.random.uniform(k3, (n_classes, n_channels, 1, 1), jnp.float32, -bp, bp)
    self.b_pw = jax.random.uniform(k4, (n_classes,), jnp.float32, -bp, bp)

  def __call__(self, x_nchw):
    return dilated_dwsep_conv(x_nchw, self.w_dw, self.b_dw, self.w_pw, self.b_pw,
                              dilation=self.dilation, dw_padding=self.dw_padding)


def _reference_forward(x_nchw, w_dw, b_dw, w_pw, b_pw, *, dilation, dw_padding):
  c = x_nchw.shape[1]
  y = lax.conv_general_dilated(
      x_nchw, w_dw, window_strides=(1, 1),
      padding=[(dw_padding, dw_padding), (dw_padding, dw_padding)],
      rhs_dilation=(dilation, dilation),
      dimension_numbers=("NCHW", "OIHW", "NCHW"),
      feature_group_count=c, precision=lax.Precision.HIGHEST)
  y = y + b_dw.reshape(1, -1, 1, 1)
  z = lax.conv_general_dilated(
      y, w_pw, window_strides=(1, 1), padding="VALID",
      dimension_numbers=("NCHW", "OIHW", "NCHW"),
      precision=lax.Precision.HIGHEST)
  return z + b_pw.reshape(1, -1, 1, 1)


# ----------------------------------------------------------------------------

if __name__ == "__main__":
  key = jax.random.PRNGKey(0)
  B, C, H, W = 2, 32, 32, 32
  n_classes = 8
  x = jax.random.normal(jax.random.fold_in(key, 0), (B, C, H, W), jnp.float32)

  # Module defaults (dilation=1, padding=1) and a dilated config (dilation=2, padding=2).
  configs = [dict(dw_padding=1, dilation=1), dict(dw_padding=2, dilation=2)]
  for idx, cfg in enumerate(configs):
    mod = DilatedDepthwiseSeparableConv(jax.random.fold_in(key, idx + 1),
                                        C, n_classes, **cfg)
    out = jax.block_until_ready(mod(x))
    ref = _reference_forward(x, mod.w_dw, mod.b_dw, mod.w_pw, mod.b_pw,
                             dilation=cfg["dilation"], dw_padding=cfg["dw_padding"])
    assert out.shape == (B, n_classes, H, W), out.shape
    assert bool(jnp.all(jnp.isfinite(out)))
    err = float(jnp.max(jnp.abs(out - ref)))
    assert err < 5e-2, f"config {cfg}: max abs err {err}"

  print("KERNEL_OK")
</pallas_src>

<mosaic_0001>
module attributes {stable_mosaic.version = 11 : i64} {
  func.func @_dsconv_kernel(%arg0: i32, %arg1: i32, %arg2: memref<1x34x34x32xf32, #tpu.memory_space<vmem>>, %arg3: memref<9x1x32xf32, #tpu.memory_space<vmem>>, %arg4: memref<1x32xf32, #tpu.memory_space<vmem>>, %arg5: memref<32x8xbf16, #tpu.memory_space<vmem>>, %arg6: memref<1x8xf32, #tpu.memory_space<vmem>>, %arg7: memref<1x16x32x8xf32, #tpu.memory_space<vmem>>) attributes {dimension_semantics = [#tpu.dimension_semantics<parallel>, #tpu.dimension_semantics<arbitrary>], iteration_bounds = array<i64: 2, 2>, scalar_prefetch = 0 : i64, scratch_operands = 0 : i64, tpu.core_type = #tpu.core_type<tc>, window_params = [{transform_indices = @transform_0, window_bounds = array<i64: 1, 34, 34, 32>}, {pipeline_mode = #tpu.pipeline_mode<synchronous>, transform_indices = @transform_1, window_bounds = array<i64: 9, 1, 32>}, {pipeline_mode = #tpu.pipeline_mode<synchronous>, transform_indices = @transform_2, window_bounds = array<i64: 1, 32>}, {pipeline_mode = #tpu.pipeline_mode<synchronous>, transform_indices = @transform_3, window_bounds = array<i64: 32, 8>}, {pipeline_mode = #tpu.pipeline_mode<synchronous>, transform_indices = @transform_4, window_bounds = array<i64: 1, 8>}, {transform_indices = @transform_5, window_bounds = array<i64: 1, 16, 32, 8>}]} {
    %c16_i32 = arith.constant 16 : i32
    %0 = arith.muli %arg1, %c16_i32 : i32
    %cst = arith.constant 0.000000e+00 : f32
    %1 = vector.broadcast %cst : f32 to vector<16x32x32xf32>
    %c0_i32 = arith.constant 0 : i32
    %2 = arith.addi %0, %c0_i32 : i32
    %c0 = arith.constant 0 : index
    %3 = arith.index_cast %2 : i32 to index
    %c0_0 = arith.constant 0 : index
    %c0_1 = arith.constant 0 : index
    %4 = vector.load %arg2[%c0, %3, %c0_0, %c0_1] : memref<1x34x34x32xf32, #tpu.memory_space<vmem>>, vector<1x16x32x32xf32>
    %5 = vector.shape_cast %4 : vector<1x16x32x32xf32> to vector<16x32x32xf32>
    %c0_2 = arith.constant 0 : index
    %c0_3 = arith.constant 0 : index
    %c0_4 = arith.constant 0 : index
    %6 = vector.load %arg3[%c0_2, %c0_3, %c0_4] : memref<9x1x32xf32, #tpu.memory_space<vmem>>, vector<1x1x32xf32>
    %7 = vector.shape_cast %6 : vector<1x1x32xf32> to vector<1x32xf32>
    %8 = vector.shape_cast %7 : vector<1x32xf32> to vector<1x1x32xf32>
    %9 = vector.broadcast %8 : vector<1x1x32xf32> to vector<16x32x32xf32>
    %10 = arith.mulf %5, %9 : vector<16x32x32xf32>
    %11 = arith.addf %1, %10 : vector<16x32x32xf32>
    %c0_i32_5 = arith.constant 0 : i32
    %12 = arith.addi %0, %c0_i32_5 : i32
    %c0_6 = arith.constant 0 : index
    %13 = arith.index_cast %12 : i32 to index
    %c1 = arith.constant 1 : index
    %c0_7 = arith.constant 0 : index
    %14 = vector.load %arg2[%c0_6, %13, %c1, %c0_7] : memref<1x34x34x32xf32, #tpu.memory_space<vmem>>, vector<1x16x32x32xf32>
    %15 = vector.shape_cast %14 : vector<1x16x32x32xf32> to vector<16x32x32xf32>
    %c1_8 = arith.constant 1 : index
    %c0_9 = arith.constant 0 : index
    %c0_10 = arith.constant 0 : index
    %16 = vector.load %arg3[%c1_8, %c0_9, %c0_10] : memref<9x1x32xf32, #tpu.memory_space<vmem>>, vector<1x1x32xf32>
    %17 = vector.shape_cast %16 : vector<1x1x32xf32> to vector<1x32xf32>
    %18 = vector.shape_cast %17 : vector<1x32xf32> to vector<1x1x32xf32>
    %19 = vector.broadcast %18 : vector<1x1x32xf32> to vector<16x32x32xf32>
    %20 = arith.mulf %15, %19 : vector<16x32x32xf32>
    %21 = arith.addf %11, %20 : vector<16x32x32xf32>
    %c0_i32_11 = arith.constant 0 : i32
    %22 = arith.addi %0, %c0_i32_11 : i32
    %c0_12 = arith.constant 0 : index
    %23 = arith.index_cast %22 : i32 to index
    %c2 = arith.constant 2 : index
    %c0_13 = arith.constant 0 : index
    %24 = vector.load %arg2[%c0_12, %23, %c2, %c0_13] : memref<1x34x34x32xf32, #tpu.memory_space<vmem>>, vector<1x16x32x32xf32>
    %25 = vector.shape_cast %24 : vector<1x16x32x32xf32> to vector<16x32x32xf32>
    %c2_14 = arith.constant 2 : index
    %c0_15 = arith.constant 0 : index
    %c0_16 = arith.constant 0 : index
    %26 = vector.load %arg3[%c2_14, %c0_15, %c0_16] : memref<9x1x32xf32, #tpu.memory_space<vmem>>, vector<1x1x32xf32>
    %27 = vector.shape_cast %26 : vector<1x1x32xf32> to vector<1x32xf32>
    %28 = vector.shape_cast %27 : vector<1x32xf32> to vector<1x1x32xf32>
    %29 = vector.broadcast %28 : vector<1x1x32xf32> to vector<16x32x32xf32>
    %30 = arith.mulf %25, %29 : vector<16x32x32xf32>
    %31 = arith.addf %21, %30 : vector<16x32x32xf32>
    %c1_i32 = arith.constant 1 : i32
    %32 = arith.addi %0, %c1_i32 : i32
    %c0_17 = arith.constant 0 : index
    %33 = arith.index_cast %32 : i32 to index
    %c0_18 = arith.constant 0 : index
    %c0_19 = arith.constant 0 : index
    %34 = vector.load %arg2[%c0_17, %33, %c0_18, %c0_19] : memref<1x34x34x32xf32, #tpu.memory_space<vmem>>, vector<1x16x32x32xf32>
    %35 = vector.shape_cast %34 : vector<1x16x32x32xf32> to vector<16x32x32xf32>
    %c3 = arith.constant 3 : index
    %c0_20 = arith.constant 0 : index
    %c0_21 = arith.constant 0 : index
    %36 = vector.load %arg3[%c3, %c0_20, %c0_21] : memref<9x1x32xf32, #tpu.memory_space<vmem>>, vector<1x1x32xf32>
    %37 = vector.shape_cast %36 : vector<1x1x32xf32> to vector<1x32xf32>
    %38 = vector.shape_cast %37 : vector<1x32xf32> to vector<1x1x32xf32>
    %39 = vector.broadcast %38 : vector<1x1x32xf32> to vector<16x32x32xf32>
    %40 = arith.mulf %35, %39 : vector<16x32x32xf32>
    %41 = arith.addf %31, %40 : vector<16x32x32xf32>
    %c1_i32_22 = arith.constant 1 : i32
    %42 = arith.addi %0, %c1_i32_22 : i32
    %c0_23 = arith.constant 0 : index
    %43 = arith.index_cast %42 : i32 to index
    %c1_24 = arith.constant 1 : index
    %c0_25 = arith.constant 0 : index
    %44 = vector.load %arg2[%c0_23, %43, %c1_24, %c0_25] : memref<1x34x34x32xf32, #tpu.memory_space<vmem>>, vector<1x16x32x32xf32>
    %45 = vector.shape_cast %44 : vector<1x16x32x32xf32> to vector<16x32x32xf32>
    %c4 = arith.constant 4 : index
    %c0_26 = arith.constant 0 : index
    %c0_27 = arith.constant 0 : index
    %46 = vector.load %arg3[%c4, %c0_26, %c0_27] : memref<9x1x32xf32, #tpu.memory_space<vmem>>, vector<1x1x32xf32>
    %47 = vector.shape_cast %46 : vector<1x1x32xf32> to vector<1x32xf32>
    %48 = vector.shape_cast %47 : vector<1x32xf32> to vector<1x1x32xf32>
    %49 = vector.broadcast %48 : vector<1x1x32xf32> to vector<16x32x32xf32>
    %50 = arith.mulf %45, %49 : vector<16x32x32xf32>
    %51 = arith.addf %41, %50 : vector<16x32x32xf32>
    %c1_i32_28 = arith.constant 1 : i32
    %52 = arith.addi %0, %c1_i32_28 : i32
    %c0_29 = arith.constant 0 : index
    %53 = arith.index_cast %52 : i32 to index
    %c2_30 = arith.constant 2 : index
    %c0_31 = arith.constant 0 : index
    %54 = vector.load %arg2[%c0_29, %53, %c2_30, %c0_31] : memref<1x34x34x32xf32, #tpu.memory_space<vmem>>, vector<1x16x32x32xf32>
    %55 = vector.shape_cast %54 : vector<1x16x32x32xf32> to vector<16x32x32xf32>
    %c5 = arith.constant 5 : index
    %c0_32 = arith.constant 0 : index
    %c0_33 = arith.constant 0 : index
    %56 = vector.load %arg3[%c5, %c0_32, %c0_33] : memref<9x1x32xf32, #tpu.memory_space<vmem>>, vector<1x1x32xf32>
    %57 = vector.shape_cast %56 : vector<1x1x32xf32> to vector<1x32xf32>
    %58 = vector.shape_cast %57 : vector<1x32xf32> to vector<1x1x32xf32>
    %59 = vector.broadcast %58 : vector<1x1x32xf32> to vector<16x32x32xf32>
    %60 = arith.mulf %55, %59 : vector<16x32x32xf32>
    %61 = arith.addf %51, %60 : vector<16x32x32xf32>
    %c2_i32 = arith.constant 2 : i32
    %62 = arith.addi %0, %c2_i32 : i32
    %c0_34 = arith.constant 0 : index
    %63 = arith.index_cast %62 : i32 to index
    %c0_35 = arith.constant 0 : index
    %c0_36 = arith.constant 0 : index
    %64 = vector.load %arg2[%c0_34, %63, %c0_35, %c0_36] : memref<1x34x34x32xf32, #tpu.memory_space<vmem>>, vector<1x16x32x32xf32>
    %65 = vector.shape_cast %64 : vector<1x16x32x32xf32> to vector<16x32x32xf32>
    %c6 = arith.constant 6 : index
    %c0_37 = arith.constant 0 : index
    %c0_38 = arith.constant 0 : index
    %66 = vector.load %arg3[%c6, %c0_37, %c0_38] : memref<9x1x32xf32, #tpu.memory_space<vmem>>, vector<1x1x32xf32>
    %67 = vector.shape_cast %66 : vector<1x1x32xf32> to vector<1x32xf32>
    %68 = vector.shape_cast %67 : vector<1x32xf32> to vector<1x1x32xf32>
    %69 = vector.broadcast %68 : vector<1x1x32xf32> to vector<16x32x32xf32>
    %70 = arith.mulf %65, %69 : vector<16x32x32xf32>
    %71 = arith.addf %61, %70 : vector<16x32x32xf32>
    %c2_i32_39 = arith.constant 2 : i32
    %72 = arith.addi %0, %c2_i32_39 : i32
    %c0_40 = arith.constant 0 : index
    %73 = arith.index_cast %72 : i32 to index
    %c1_41 = arith.constant 1 : index
    %c0_42 = arith.constant 0 : index
    %74 = vector.load %arg2[%c0_40, %73, %c1_41, %c0_42] : memref<1x34x34x32xf32, #tpu.memory_space<vmem>>, vector<1x16x32x32xf32>
    %75 = vector.shape_cast %74 : vector<1x16x32x32xf32> to vector<16x32x32xf32>
    %c7 = arith.constant 7 : index
    %c0_43 = arith.constant 0 : index
    %c0_44 = arith.constant 0 : index
    %76 = vector.load %arg3[%c7, %c0_43, %c0_44] : memref<9x1x32xf32, #tpu.memory_space<vmem>>, vector<1x1x32xf32>
    %77 = vector.shape_cast %76 : vector<1x1x32xf32> to vector<1x32xf32>
    %78 = vector.shape_cast %77 : vector<1x32xf32> to vector<1x1x32xf32>
    %79 = vector.broadcast %78 : vector<1x1x32xf32> to vector<16x32x32xf32>
    %80 = arith.mulf %75, %79 : vector<16x32x32xf32>
    %81 = arith.addf %71, %80 : vector<16x32x32xf32>
    %c2_i32_45 = arith.constant 2 : i32
    %82 = arith.addi %0, %c2_i32_45 : i32
    %c0_46 = arith.constant 0 : index
    %83 = arith.index_cast %82 : i32 to index
    %c2_47 = arith.constant 2 : index
    %c0_48 = arith.constant 0 : index
    %84 = vector.load %arg2[%c0_46, %83, %c2_47, %c0_48] : memref<1x34x34x32xf32, #tpu.memory_space<vmem>>, vector<1x16x32x32xf32>
    %85 = vector.shape_cast %84 : vector<1x16x32x32xf32> to vector<16x32x32xf32>
    %c8 = arith.constant 8 : index
    %c0_49 = arith.constant 0 : index
    %c0_50 = arith.constant 0 : index
    %86 = vector.load %arg3[%c8, %c0_49, %c0_50] : memref<9x1x32xf32, #tpu.memory_space<vmem>>, vector<1x1x32xf32>
    %87 = vector.shape_cast %86 : vector<1x1x32xf32> to vector<1x32xf32>
    %88 = vector.shape_cast %87 : vector<1x32xf32> to vector<1x1x32xf32>
    %89 = vector.broadcast %88 : vector<1x1x32xf32> to vector<16x32x32xf32>
    %90 = arith.mulf %85, %89 : vector<16x32x32xf32>
    %91 = arith.addf %81, %90 : vector<16x32x32xf32>
    %92 = vector.shape_cast %91 : vector<16x32x32xf32> to vector<512x32xf32>
    %c0_51 = arith.constant 0 : index
    %c0_52 = arith.constant 0 : index
    %93 = vector.load %arg4[%c0_51, %c0_52] : memref<1x32xf32, #tpu.memory_space<vmem>>, vector<1x32xf32>
    %94 = vector.broadcast %93 : vector<1x32xf32> to vector<512x32xf32>
    %95 = arith.addf %92, %94 : vector<512x32xf32>
    %96 = arith.truncf %95 : vector<512x32xf32> to vector<512x32xbf16>
    %c0_53 = arith.constant 0 : index
    %c0_54 = arith.constant 0 : index
    %97 = vector.load %arg5[%c0_53, %c0_54] : memref<32x8xbf16, #tpu.memory_space<vmem>>, vector<32x8xbf16>
    %cst_55 = arith.constant dense<0.000000e+00> : vector<512x8xf32>
    %98 = tpu.matmul %96, %97, %cst_55 {dimension_numbers = #tpu.dot_dimension_numbers<[1], [0], [0], [1], [0, 0, 1, 1], [], []>} : vector<512x32xbf16>, vector<32x8xbf16>, vector<512x8xf32> -> vector<512x8xf32>
    %c0_56 = arith.constant 0 : index
    %c0_57 = arith.constant 0 : index
    %99 = vector.load %arg6[%c0_56, %c0_57] : memref<1x8xf32, #tpu.memory_space<vmem>>, vector<1x8xf32>
    %100 = vector.broadcast %99 : vector<1x8xf32> to vector<512x8xf32>
    %101 = arith.addf %98, %100 : vector<512x8xf32>
    %102 = vector.shape_cast %101 : vector<512x8xf32> to vector<16x32x8xf32>
    %c0_58 = arith.constant 0 : index
    %c0_59 = arith.constant 0 : index
    %c0_60 = arith.constant 0 : index
    %c0_61 = arith.constant 0 : index
    %103 = vector.load %arg7[%c0_58, %c0_59, %c0_60, %c0_61] : memref<1x16x32x8xf32, #tpu.memory_space<vmem>>, vector<1x16x32x8xf32>
    %104 = vector.shape_cast %103 : vector<1x16x32x8xf32> to vector<16x32x8xf32>
    %105 = vector.shape_cast %102 : vector<16x32x8xf32> to vector<1x16x32x8xf32>
    tpu.vector_store %arg7[%c0_58, %c0_59, %c0_60, %c0_61], %105 {strides = array<i32>} : memref<1x16x32x8xf32, #tpu.memory_space<vmem>>, vector<1x16x32x8xf32>,
    return
  }
  func.func @transform_0(%arg0: i32, %arg1: i32) -> (i32, i32, i32, i32) {
    %c0_i32 = arith.constant 0 : i32
    %c0_i32_0 = arith.constant 0 : i32
    %c0_i32_1 = arith.constant 0 : i32
    %c0_i32_2 = arith.constant 0 : i32
    return %arg0, %c0_i32, %c0_i32_0, %c0_i32_1 : i32, i32, i32, i32
  }
  func.func @transform_1(%arg0: i32, %arg1: i32) -> (i32, i32, i32) {
    %c0_i32 = arith.constant 0 : i32
    %c0_i32_0 = arith.constant 0 : i32
    %c0_i32_1 = arith.constant 0 : i32
    %c0_i32_2 = arith.constant 0 : i32
    return %c0_i32, %c0_i32_0, %c0_i32_1 : i32, i32, i32
  }
  func.func @transform_2(%arg0: i32, %arg1: i32) -> (i32, i32) {
    %c0_i32 = arith.constant 0 : i32
    %c0_i32_0 = arith.constant 0 : i32
    %c0_i32_1 = arith.constant 0 : i32
    return %c0_i32, %c0_i32_0 : i32, i32
  }
  func.func @transform_3(%arg0: i32, %arg1: i32) -> (i32, i32) {
    %c0_i32 = arith.constant 0 : i32
    %c0_i32_0 = arith.constant 0 : i32
    %c0_i32_1 = arith.constant 0 : i32
    return %c0_i32, %c0_i32_0 : i32, i32
  }
  func.func @transform_4(%arg0: i32, %arg1: i32) -> (i32, i32) {
    %c0_i32 = arith.constant 0 : i32
    %c0_i32_0 = arith.constant 0 : i32
    %c0_i32_1 = arith.constant 0 : i32
    return %c0_i32, %c0_i32_0 : i32, i32
  }
  func.func @transform_5(%arg0: i32, %arg1: i32) -> (i32, i32, i32, i32) {
    %c0_i32 = arith.constant 0 : i32
    %c0_i32_0 = arith.constant 0 : i32
    %c0_i32_1 = arith.constant 0 : i32
    return %arg0, %arg1, %c0_i32, %c0_i32_0 : i32, i32, i32, i32
  }
}

</mosaic_0001>

<llo_original>
// kernel: dilated_dwsep_conv.1
$region0: #{dilated_dwsep_conv.1}
  #allocation0 [shape = 'u32[]', space=smem, size = 0x4, offset = 0x4, fixed_abs, tag = 'smem constant byte address 0x4 - core index']
  #allocation1 [shape = 'u32[144,128]{1,0:T(1,128)}', space=vmem, size = 0x12000, scoped, tag = 'internal scratch']
  %s0 = inlined_call_operand.vmem [shape: f32[2,34,34,32], index: 0, kind: input, shape index: {}]
  %s1 = inlined_call_operand.vmem [shape: f32[9,1,32], index: 1, kind: input, shape index: {}]
  %s2 = inlined_call_operand.vmem [shape: f32[1,32], index: 2, kind: input, shape index: {}]
  %s3 = inlined_call_operand.vmem [shape: bf16[32,8], index: 3, kind: input, shape index: {}]
  %s4 = inlined_call_operand.vmem [shape: f32[1,8], index: 4, kind: input, shape index: {}]
  %s5 = inlined_call_operand.vmem [shape: f32[2,32,32,8], index: 5, kind: output, shape index: {}]
  %s6 = sld [smem:[#allocation0]]
  $region53: #{dilated_dwsep_conv.1} parent=0
    _
  %s8 = ssub.s32 1, %s6
  %s9 = scalar_select 0, %s8, %s6
  loop: start=0, step=1, limit=6
  $region2: #{dilated_dwsep_conv.1} parent=0 // loop_pre_header
    _
  $region3: #{dilated_dwsep_conv.1} parent=0 // loop_header
    %s11 = sphi 0, %s15
    %p12 = scmp.ge.s32.totalorder %s11, 6
    %s18 = sphi 0, %s30
    %s19 = sphi 0, %s26
    %s20 = sphi 0, %s18
    %s21 = sphi 0, %s19
    %s22 = sphi 0, %s20
    %s23 = sphi 0, %s21
    %s33 = sphi 0, %s35
    %s36 = sphi 0, %s33
    %s37 = sphi 0, %s36
    %s53 = sphi 0, %s37
    %s57 = sphi 0, %s57
    %s59 = sphi 0, %s57
    %s60 = sphi 0, %s59
    %s74 = sphi 0, %s60
    %s78 = sphi 0, %s78
    %s80 = sphi 0, %s78
    %s81 = sphi 0, %s80
    %s95 = sphi 0, %s81
    %s99 = sphi 0, %s99
    %s101 = sphi 0, %s99
    %s102 = sphi 0, %s101
    %s116 = sphi 0, %s102
    %s120 = sphi 0, %s120
    %s122 = sphi 0, %s120
    %s123 = sphi 0, %s122
    %s137 = sphi 0, %s123
    %s145 = sphi 0, %s147
    %s148 = sphi 0, %s145
    %s149 = sphi 0, %s148
    %s165 = sphi 0, %s149
  $region4: #{dilated_dwsep_conv.1} parent=0 // loop_header_branch
    %14 = sbr.rel (%p12) target = $region8
  $region5: #{dilated_dwsep_conv.1} parent=0 // loop_body
    %s16 = ssub.s32 %s11, 1
    %s17 = ssub.s32 %s11, 2
    %s24 = sadd.s32 1, %s19
    %p25 = scmp.ge.s32.totalorder %s24, 2
    %s26 = scalar_select %p25, 0, %s24
    %s27 = sadd.s32 1, %s18
    %s28 = scalar_select %p25, %s27, %s18
    %p29 = scmp.ge.s32.totalorder %s28, 2
    %s30 = scalar_select %p29, 0, %s28
    %s31 = ssub.s32 %s18, %s30
    %p32 = scmp.eq.s32.totalorder %s31, 0
    %s34 = sadd.s32 %s33, 1
    %s35 = scalar_select %p32, %s33, %s34
    %p38 = pneg %p32
    %p39 = scmp.eq.s32.totalorder %s11, 3
    %p40 = por %p38, %p39
    %p41 = scmp.ne.s32.totalorder %s33, %s36
    %p42 = scmp.eq.s32.totalorder %s11, 0
    %p43 = por %p41, %p42
    %p44 = scmp.ne.s32.totalorder %s33, %s36
    %p45 = scmp.eq.s32.totalorder %s16, 3
    %p46 = por %p44, %p45
    %p47 = scmp.ne.s32.totalorder %s36, %s37
    %p48 = scmp.eq.s32.totalorder %s16, 0
    %p49 = por %p47, %p48
    %p50 = scmp.ne.s32.totalorder %s36, %s37
    %p51 = scmp.eq.s32.totalorder %s17, 3
    %p52 = por %p50, %p51
    %p54 = scmp.ne.s32.totalorder %s37, %s53
    %p55 = scmp.eq.s32.totalorder %s17, 0
    %p56 = por %p54, %p55
    %s58 = sadd.s32 %s57, 1
    %p61 = scmp.eq.s32.totalorder %s11, 3
    %p62 = scmp.ne.s32.totalorder %s57, %s59
    %p63 = scmp.eq.s32.totalorder %s11, 0
    %p64 = por %p62, %p63
    %p65 = scmp.ne.s32.totalorder %s57, %s59
    %p66 = scmp.eq.s32.totalorder %s16, 3
    %p67 = por %p65, %p66
    %p68 = scmp.ne.s32.totalorder %s59, %s60
    %p69 = scmp.eq.s32.totalorder %s16, 0
    %p70 = por %p68, %p69
    %p71 = scmp.ne.s32.totalorder %s59, %s60
    %p72 = scmp.eq.s32.totalorder %s17, 3
    %p73 = por %p71, %p72
    %p75 = scmp.ne.s32.totalorder %s60, %s74
    %p76 = scmp.eq.s32.totalorder %s17, 0
    %p77 = por %p75, %p76
    %s79 = sadd.s32 %s78, 1
    %p82 = scmp.eq.s32.totalorder %s11, 3
    %p83 = scmp.ne.s32.totalorder %s78, %s80
    %p84 = scmp.eq.s32.totalorder %s11, 0
    %p85 = por %p83, %p84
    %p86 = scmp.ne.s32.totalorder %s78, %s80
    %p87 = scmp.eq.s32.totalorder %s16, 3
    %p88 = por %p86, %p87
    %p89 = scmp.ne.s32.totalorder %s80, %s81
    %p90 = scmp.eq.s32.totalorder %s16, 0
    %p91 = por %p89, %p90
    %p92 = scmp.ne.s32.totalorder %s80, %s81
    %p93 = scmp.eq.s32.totalorder %s17, 3
    %p94 = por %p92, %p93
    %p96 = scmp.ne.s32.totalorder %s81, %s95
    %p97 = scmp.eq.s32.totalorder %s17, 0
    %p98 = por %p96, %p97
    %s100 = sadd.s32 %s99, 1
    %p103 = scmp.eq.s32.totalorder %s11, 3
    %p104 = scmp.ne.s32.totalorder %s99, %s101
    %p105 = scmp.eq.s32.totalorder %s11, 0
    %p106 = por %p104, %p105
    %p107 = scmp.ne.s32.totalorder %s99, %s101
    %p108 = scmp.eq.s32.totalorder %s16, 3
    %p109 = por %p107, %p108
    %p110 = scmp.ne.s32.totalorder %s101, %s102
    %p111 = scmp.eq.s32.totalorder %s16, 0
    %p112 = por %p110, %p111
    %p113 = scmp.ne.s32.totalorder %s101, %s102
    %p114 = scmp.eq.s32.totalorder %s17, 3
    %p115 = por %p113, %p114
    %p117 = scmp.ne.s32.totalorder %s102, %s116
    %p118 = scmp.eq.s32.totalorder %s17, 0
    %p119 = por %p117, %p118
    %s121 = sadd.s32 %s120, 1
    %p124 = scmp.eq.s32.totalorder %s11, 3
    %p125 = scmp.ne.s32.totalorder %s120, %s122
    %p126 = scmp.eq.s32.totalorder %s11, 0
    %p127 = por %p125, %p126
    %p128 = scmp.ne.s32.totalorder %s120, %s122
    %p129 = scmp.eq.s32.totalorder %s16, 3
    %p130 = por %p128, %p129
    %p131 = scmp.ne.s32.totalorder %s122, %s123
    %p132 = scmp.eq.s32.totalorder %s16, 0
    %p133 = por %p131, %p132
    %p134 = scmp.ne.s32.totalorder %s122, %s123
    %p135 = scmp.eq.s32.totalorder %s17, 3
    %p136 = por %p134, %p135
    %p138 = scmp.ne.s32.totalorder %s123, %s137
    %p139 = scmp.eq.s32.totalorder %s17, 0
    %p140 = por %p138, %p139
    %s141 = ssub.s32 %s18, %s30
    %s142 = ssub.s32 %s19, %s26
    %s143 = sor.u32 %s141, %s142
    %p144 = scmp.eq.s32.totalorder %s143, 0
    %s146 = sadd.s32 %s145, 1
    %s147 = scalar_select %p144, %s145, %s146
    %p150 = pneg %p144
    %p151 = scmp.eq.s32.totalorder %s11, 3
    %p152 = por %p150, %p151
    %p153 = scmp.ne.s32.totalorder %s145, %s148
    %p154 = scmp.eq.s32.totalorder %s11, 0
    %p155 = por %p153, %p154
    %p156 = scmp.ne.s32.totalorder %s145, %s148
    %p157 = scmp.eq.s32.totalorder %s16, 3
    %p158 = por %p156, %p157
    %p159 = scmp.ne.s32.totalorder %s148, %s149
    %p160 = scmp.eq.s32.totalorder %s16, 0
    %p161 = por %p159, %p160
    %p162 = scmp.ne.s32.totalorder %s148, %s149
    %p163 = scmp.eq.s32.totalorder %s17, 3
    %p164 = por %p162, %p163
    %p166 = scmp.ne.s32.totalorder %s149, %s165
    %p167 = scmp.eq.s32.totalorder %s17, 0
    %p168 = por %p166, %p167
    %p169 = scmp.le.s32.totalorder 1, %s11
    %p170 = scmp.lt.s32.totalorder %s11, 5
    %p171 = pnand %p169, %p170
    %p172 = pneg %p171
    // Predicated region
    $region9: #{dilated_dwsep_conv.1} parent=5 // pred_check
      _
    $region10: #{dilated_dwsep_conv.1} parent=5 // pred_check_branch
      %174 = sbr.rel (%p171) target = $region12
    $region11: #{dilated_dwsep_conv.1} parent=5 // pred_region
      %s175 = ssub.s32 %s11, 1
      // Predicated region
      $region13: #{dilated_dwsep_conv.1} parent=11 // pred_check
        %p176 = pneg %p70
      $region14: #{dilated_dwsep_conv.1} parent=11 // pred_check_branch
        %178 = sbr.rel (%p176) target = $region16
      $region15: #{dilated_dwsep_conv.1} parent=11 // pred_region
        _
      $region16: #{dilated_dwsep_conv.1} parent=11 // pred_fallthru
        _
      // Predicated region
      $region17: #{dilated_dwsep_conv.1} parent=11 // pred_check
        %p179 = pneg %p91
      $region18: #{dilated_dwsep_conv.1} parent=11 // pred_check_branch
        %181 = sbr.rel (%p179) target = $region20
      $region19: #{dilated_dwsep_conv.1} parent=11 // pred_region
        _
      $region20: #{dilated_dwsep_conv.1} parent=11 // pred_fallthru
        _
      // Predicated region
      $region21: #{dilated_dwsep_conv.1} parent=11 // pred_check
        %p182 = pneg %p112
      $region22: #{dilated_dwsep_conv.1} parent=11 // pred_check_branch
        %184 = sbr.rel (%p182) target = $region24
      $region23: #{dilated_dwsep_conv.1} parent=11 // pred_region
        _
      $region24: #{dilated_dwsep_conv.1} parent=11 // pred_fallthru
        _
      // Predicated region
      $region25: #{dilated_dwsep_conv.1} parent=11 // pred_check
        %p185 = pneg %p133
      $region26: #{dilated_dwsep_conv.1} parent=11 // pred_check_branch
        %187 = sbr.rel (%p185) target = $region28
      $region27: #{dilated_dwsep_conv.1} parent=11 // pred_region
        _
      $region28: #{dilated_dwsep_conv.1} parent=11 // pred_fallthru
        _
    $region12: #{dilated_dwsep_conv.1} parent=5 // pred_fallthru
      _
    %p188 = scmp.lt.s32.totalorder %s11, 4
    // Predicated region
    $region29: #{dilated_dwsep_conv.1} parent=5 // pred_check
      %p189 = pneg %p188
    $region30: #{dilated_dwsep_conv.1} parent=5 // pred_check_branch
      %191 = sbr.rel (%p189) target = $region32
    $region31: #{dilated_dwsep_conv.1} parent=5 // pred_region
      // Predicated region
      $region33: #{dilated_dwsep_conv.1} parent=31 // pred_check
        %p192 = pneg %p43
      $region34: #{dilated_dwsep_conv.1} parent=31 // pred_check_branch
        %194 = sbr.rel (%p192) target = $region36
      $region35: #{dilated_dwsep_conv.1} parent=31 // pred_region
        %p195 = scmp.lt.s32.totalorder %s18, 1
        %s196 = scalar_select %p195, %s18, 1
        %s197 = smul.addr %s196, 170
        %s198 = smul.addr %s197, 8
        %s199 = scalar_lea.vmem %s0, %s198
      $region36: #{dilated_dwsep_conv.1} parent=31 // pred_fallthru
        _
    $region32: #{dilated_dwsep_conv.1} parent=5 // pred_fallthru
      _
    %p200 = scmp.le.s32.totalorder 1, %s11
    %p201 = scmp.lt.s32.totalorder %s11, 5
    %p202 = pnand %p200, %p201
    %p203 = pneg %p202
    // Predicated region
    $region37: #{dilated_dwsep_conv.1} parent=5 // pred_check
      _
    $region38: #{dilated_dwsep_conv.1} parent=5 // pred_check_branch
      %205 = sbr.rel (%p202) target = $region40
    $region39: #{dilated_dwsep_conv.1} parent=5 // pred_region
      %s206 = ssub.s32 %s11, 1
      %p207 = scmp.lt.s32.totalorder %s20, 1
      %s208 = scalar_select %p207, %s20, 1
      %s209 = smul.addr %s208, 170
      %s210 = smul.addr %s209, 8
      %s211 = scalar_lea.vmem %s0, %s210
      %p212 = pneg %p49
      %p213 = pneg %p46
      %p214 = pneg %p70
      %p215 = pneg %p67
      %p216 = pneg %p91
      %p217 = pneg %p88
      %p218 = pneg %p112
      %p219 = pneg %p109
      %p220 = pneg %p133
      %p221 = pneg %p130
      %p222 = pneg %p161
      %p223 = pneg %p158
      %s224 = smul.u32 16, %s21
      %p225 = scmp.lt.s32.totalorder %s20, 1
      %s226 = scalar_select %p225, %s20, 1
      %p227 = scmp.lt.s32.totalorder %s224, 31
      %s228 = scalar_select %p227, %s224, 31
      %s229 = smul.addr %s228, 4
      %s230 = smul.addr %s226, 128
      %s231 = sadd.s32 %s229, %s230
      %s232 = smul.addr %s231, 8
      %s233 = scalar_lea.vmem %s5, %s232
      %p234 = scmp.lt.s32.totalorder %s20, 1
      %s235 = scalar_select %p234, %s20, 1
      %s236 = smul.addr %s235, 170
      %s237 = smul.addr %s236, 8
      %s238 = scalar_lea.vmem %s0, %s237
      %s239 = smul.u32 16, %s21
      %p240 = scmp.lt.s32.totalorder %s20, 1
      %s241 = scalar_select %p240, %s20, 1
      %p242 = scmp.lt.s32.totalorder %s239, 31
      %s243 = scalar_select %p242, %s239, 31
      %s244 = smul.addr %s243, 4
      %s245 = smul.addr %s241, 128
      %s246 = sadd.s32 %s244, %s245
      %s247 = smul.addr %s246, 8
      %s248 = scalar_lea.vmem %s5, %s247
      %s249 = smul.u32 16, %s21
      %s251 = smul.u32 %s21, 16
      %s252 = smul.u32 %s251, 40
      %s253 = scalar_lea.vmem %s238, %s252
      %v254 = vld [vmem:[%s253] sm:$0xff]
      %v255 = vld [vmem:[%s253 + $0x8] sm:$0xff]
      %v256 = vld [vmem:[%s253 + $0x10] sm:$0xff]
      %v257 = vld [vmem:[%s253 + $0x18] sm:$0xff]
      %v258 = vld [vmem:[%s253 + $0x28] sm:$0xff]
      %v259 = vld [vmem:[%s253 + $0x30] sm:$0xff]
      %v260 = vld [vmem:[%s253 + $0x38] sm:$0xff]
      %v261 = vld [vmem:[%s253 + $0x40] sm:$0xff]
      %v262 = vld [vmem:[%s253 + $0x50] sm:$0xff]
      %v263 = vld [vmem:[%s253 + $0x58] sm:$0xff]
      %v264 = vld [vmem:[%s253 + $0x60] sm:$0xff]
      %v265 = vld [vmem:[%s253 + $0x68] sm:$0xff]
      %v266 = vld [vmem:[%s253 + $0x78] sm:$0xff]
      %v267 = vld [vmem:[%s253 + $0x80] sm:$0xff]
      %v268 = vld [vmem:[%s253 + $0x88] sm:$0xff]
      %v269 = vld [vmem:[%s253 + $0x90] sm:$0xff]
      %v270 = vld [vmem:[%s253 + $0xa0] sm:$0xff]
      %v271 = vld [vmem:[%s253 + $0xa8] sm:$0xff]
      %v272 = vld [vmem:[%s253 + $0xb0] sm:$0xff]
      %v273 = vld [vmem:[%s253 + $0xb8] sm:$0xff]
      %v274 = vld [vmem:[%s253 + $0xc8] sm:$0xff]
      %v275 = vld [vmem:[%s253 + $0xd0] sm:$0xff]
      %v276 = vld [vmem:[%s253 + $0xd8] sm:$0xff]
      %v277 = vld [vmem:[%s253 + $0xe0] sm:$0xff]
      %v278 = vld [vmem:[%s253 + $0xf0] sm:$0xff]
      %v279 = vld [vmem:[%s253 + $0xf8] sm:$0xff]
      %v280 = vld [vmem:[%s253 + $0x100] sm:$0xff]
      %v281 = vld [vmem:[%s253 + $0x108] sm:$0xff]
      %v282 = vld [vmem:[%s253 + $0x118] sm:$0xff]
      %v283 = vld [vmem:[%s253 + $0x120] sm:$0xff]
      %v284 = vld [vmem:[%s253 + $0x128] sm:$0xff]
      %v285 = vld [vmem:[%s253 + $0x130] sm:$0xff]
      %v286 = vld [vmem:[%s253 + $0x140] sm:$0xff]
      %v287 = vld [vmem:[%s253 + $0x148] sm:$0xff]
      %v288 = vld [vmem:[%s253 + $0x150] sm:$0xff]
      %v289 = vld [vmem:[%s253 + $0x158] sm:$0xff]
      %v290 = vld [vmem:[%s253 + $0x168] sm:$0xff]
      %v291 = vld [vmem:[%s253 + $0x170] sm:$0xff]
      %v292 = vld [vmem:[%s253 + $0x178] sm:$0xff]
      %v293 = vld [vmem:[%s253 + $0x180] sm:$0xff]
      %v294 = vld [vmem:[%s253 + $0x190] sm:$0xff]
      %v295 = vld [vmem:[%s253 + $0x198] sm:$0xff]
      %v296 = vld [vmem:[%s253 + $0x1a0] sm:$0xff]
      %v297 = vld [vmem:[%s253 + $0x1a8] sm:$0xff]
      %v298 = vld [vmem:[%s253 + $0x1b8] sm:$0xff]
      %v299 = vld [vmem:[%s253 + $0x1c0] sm:$0xff]
      %v300 = vld [vmem:[%s253 + $0x1c8] sm:$0xff]
      %v301 = vld [vmem:[%s253 + $0x1d0] sm:$0xff]
      %v302 = vld [vmem:[%s253 + $0x1e0] sm:$0xff]
      %v303 = vld [vmem:[%s253 + $0x1e8] sm:$0xff]
      %v304 = vld [vmem:[%s253 + $0x1f0] sm:$0xff]
      %v305 = vld [vmem:[%s253 + $0x1f8] sm:$0xff]
      %v306 = vld [vmem:[%s253 + $0x208] sm:$0xff]
      %v307 = vld [vmem:[%s253 + $0x210] sm:$0xff]
      %v308 = vld [vmem:[%s253 + $0x218] sm:$0xff]
      %v309 = vld [vmem:[%s253 + $0x220] sm:$0xff]
      %v310 = vld [vmem:[%s253 + $0x230] sm:$0xff]
      %v311 = vld [vmem:[%s253 + $0x238] sm:$0xff]
      %v312 = vld [vmem:[%s253 + $0x240] sm:$0xff]
      %v313 = vld [vmem:[%s253 + $0x248] sm:$0xff]
      %v314 = vld [vmem:[%s253 + $0x258] sm:$0xff]
      %v315 = vld [vmem:[%s253 + $0x260] sm:$0xff]
      %v316 = vld [vmem:[%s253 + $0x268] sm:$0xff]
      %v317 = vld [vmem:[%s253 + $0x270] sm:$0xff]
      %v318 = vld [vmem:[%s1] sm:$0x1]
      %v320 = vlaneseq
      %v321 = vshrl.u32 %v320, 7
      %v322 = vsub.s32 0, %v321
      %v323 = vrot.slane %v318, %v322
      %v325 = vmul.f32 %v254, %v323
      %v326 = vmul.f32 %v255, %v323
      %v327 = vmul.f32 %v256, %v323
      %v328 = vmul.f32 %v257, %v323
      %v329 = vmul.f32 %v258, %v323
      %v330 = vmul.f32 %v259, %v323
      %v331 = vmul.f32 %v260, %v323
      %v332 = vmul.f32 %v261, %v323
      %v333 = vmul.f32 %v262, %v323
      %v334 = vmul.f32 %v263, %v323
      %v335 = vmul.f32 %v264, %v323
      %v336 = vmul.f32 %v265, %v323
      %v337 = vmul.f32 %v266, %v323
      %v338 = vmul.f32 %v267, %v323
      %v339 = vmul.f32 %v268, %v323
      %v340 = vmul.f32 %v269, %v323
      %v341 = vmul.f32 %v270, %v323
      %v342 = vmul.f32 %v271, %v323
      %v343 = vmul.f32 %v272, %v323
      %v344 = vmul.f32 %v273, %v323
      %v345 = vmul.f32 %v274, %v323
      %v346 = vmul.f32 %v275, %v323
      %v347 = vmul.f32 %v276, %v323
      %v348 = vmul.f32 %v277, %v323
      %v349 = vmul.f32 %v278, %v323
      %v350 = vmul.f32 %v279, %v323
      %v351 = vmul.f32 %v280, %v323
      %v352 = vmul.f32 %v281, %v323
      %v353 = vmul.f32 %v282, %v323
      %v354 = vmul.f32 %v283, %v323
      %v355 = vmul.f32 %v284, %v323
      %v356 = vmul.f32 %v285, %v323
      %v357 = vmul.f32 %v286, %v323
      %v358 = vmul.f32 %v287, %v323
      %v359 = vmul.f32 %v288, %v323
      %v360 = vmul.f32 %v289, %v323
      %v361 = vmul.f32 %v290, %v323
      %v362 = vmul.f32 %v291, %v323
      %v363 = vmul.f32 %v292, %v323
      %v364 = vmul.f32 %v293, %v323
      %v365 = vmul.f32 %v294, %v323
      %v366 = vmul.f32 %v295, %v323
      %v367 = vmul.f32 %v296, %v323
      %v368 = vmul.f32 %v297, %v323
      %v369 = vmul.f32 %v298, %v323
      %v370 = vmul.f32 %v299, %v323
      %v371 = vmul.f32 %v300, %v323
      %v372 = vmul.f32 %v301, %v323
      %v373 = vmul.f32 %v302, %v323
      %v374 = vmul.f32 %v303, %v323
      %v375 = vmul.f32 %v304, %v323
      %v376 = vmul.f32 %v305, %v323
      %v377 = vmul.f32 %v306, %v323
      %v378 = vmul.f32 %v307, %v323
      %v379 = vmul.f32 %v308, %v323
      %v380 = vmul.f32 %v309, %v323
      %v381 = vmul.f32 %v310, %v323
      %v382 = vmul.f32 %v311, %v323
      %v383 = vmul.f32 %v312, %v323
      %v384 = vmul.f32 %v313, %v323
      %v385 = vmul.f32 %v314, %v323
      %v386 = vmul.f32 %v315, %v323
      %v387 = vmul.f32 %v316, %v323
      %v388 = vmul.f32 %v317, %v323
      %v389 = vadd.f32 %v325, 0.0
      %v390 = vadd.f32 %v326, 0.0
      %v391 = vadd.f32 %v327, 0.0
      %v392 = vadd.f32 %v328, 0.0
      %v393 = vadd.f32 %v329, 0.0
      %v394 = vadd.f32 %v330, 0.0
      %v395 = vadd.f32 %v331, 0.0
      %v396 = vadd.f32 %v332, 0.0
      %v397 = vadd.f32 %v333, 0.0
      %v398 = vadd.f32 %v334, 0.0
      %v399 = vadd.f32 %v335, 0.0
      %v400 = vadd.f32 %v336, 0.0
      %v401 = vadd.f32 %v337, 0.0
      %v402 = vadd.f32 %v338, 0.0
      %v403 = vadd.f32 %v339, 0.0
      %v404 = vadd.f32 %v340, 0.0
      %v405 = vadd.f32 %v341, 0.0
      %v406 = vadd.f32 %v342, 0.0
      %v407 = vadd.f32 %v343, 0.0
      %v408 = vadd.f32 %v344, 0.0
      %v409 = vadd.f32 %v345, 0.0
      %v410 = vadd.f32 %v346, 0.0
      %v411 = vadd.f32 %v347, 0.0
      %v412 = vadd.f32 %v348, 0.0
      %v413 = vadd.f32 %v349, 0.0
      %v414 = vadd.f32 %v350, 0.0
      %v415 = vadd.f32 %v351, 0.0
      %v416 = vadd.f32 %v352, 0.0
      %v417 = vadd.f32 %v353, 0.0
      %v418 = vadd.f32 %v354, 0.0
      %v419 = vadd.f32 %v355, 0.0
      %v420 = vadd.f32 %v356, 0.0
      %v421 = vadd.f32 %v357, 0.0
      %v422 = vadd.f32 %v358, 0.0
      %v423 = vadd.f32 %v359, 0.0
      %v424 = vadd.f32 %v360, 0.0
      %v425 = vadd.f32 %v361, 0.0
      %v426 = vadd.f32 %v362, 0.0
      %v427 = vadd.f32 %v363, 0.0
      %v428 = vadd.f32 %v364, 0.0
      %v429 = vadd.f32 %v365, 0.0
      %v430 = vadd.f32 %v366, 0.0
      %v431 = vadd.f32 %v367, 0.0
      %v432 = vadd.f32 %v368, 0.0
      %v433 = vadd.f32 %v369, 0.0
      %v434 = vadd.f32 %v370, 0.0
      %v435 = vadd.f32 %v371, 0.0
      %v436 = vadd.f32 %v372, 0.0
      %v437 = vadd.f32 %v373, 0.0
      %v438 = vadd.f32 %v374, 0.0
      %v439 = vadd.f32 %v375, 0.0
      %v440 = vadd.f32 %v376, 0.0
      %v441 = vadd.f32 %v377, 0.0
      %v442 = vadd.f32 %v378, 0.0
      %v443 = vadd.f32 %v379, 0.0
      %v444 = vadd.f32 %v380, 0.0
      %v445 = vadd.f32 %v381, 0.0
      %v446 = vadd.f32 %v382, 0.0
      %v447 = vadd.f32 %v383, 0.0
      %v448 = vadd.f32 %v384, 0.0
      %v449 = vadd.f32 %v385, 0.0
      %v450 = vadd.f32 %v386, 0.0
      %v451 = vadd.f32 %v387, 0.0
      %v452 = vadd.f32 %v388, 0.0
      %v453 = vld [vmem:[%s253 + $0x1] sm:$0xff]
      %v454 = vld [vmem:[%s253 + $0x9] sm:$0xff]
      %v455 = vld [vmem:[%s253 + $0x11] sm:$0xff]
      %v456 = vld [vmem:[%s253 + $0x19] sm:$0xff]
      %v457 = vld [vmem:[%s253 + $0x29] sm:$0xff]
      %v458 = vld [vmem:[%s253 + $0x31] sm:$0xff]
      %v459 = vld [vmem:[%s253 + $0x39] sm:$0xff]
      %v460 = vld [vmem:[%s253 + $0x41] sm:$0xff]
      %v461 = vld [vmem:[%s253 + $0x51] sm:$0xff]
      %v462 = vld [vmem:[%s253 + $0x59] sm:$0xff]
      %v463 = vld [vmem:[%s253 + $0x61] sm:$0xff]
      %v464 = vld [vmem:[%s253 + $0x69] sm:$0xff]
      %v465 = vld [vmem:[%s253 + $0x79] sm:$0xff]
      %v466 = vld [vmem:[%s253 + $0x81] sm:$0xff]
      %v467 = vld [vmem:[%s253 + $0x89] sm:$0xff]
      %v468 = vld [vmem:[%s253 + $0x91] sm:$0xff]
      %v469 = vld [vmem:[%s253 + $0xa1] sm:$0xff]
      %v470 = vld [vmem:[%s253 + $0xa9] sm:$0xff]
      %v471 = vld [vmem:[%s253 + $0xb1] sm:$0xff]
      %v472 = vld [vmem:[%s253 + $0xb9] sm:$0xff]
      %v473 = vld [vmem:[%s253 + $0xc9] sm:$0xff]
      %v474 = vld [vmem:[%s253 + $0xd1] sm:$0xff]
      %v475 = vld [vmem:[%s253 + $0xd9] sm:$0xff]
      %v476 = vld [vmem:[%s253 + $0xe1] sm:$0xff]
      %v477 = vld [vmem:[%s253 + $0xf1] sm:$0xff]
      %v478 = vld [vmem:[%s253 + $0xf9] sm:$0xff]
      %v479 = vld [vmem:[%s253 + $0x101] sm:$0xff]
      %v480 = vld [vmem:[%s253 + $0x109] sm:$0xff]
      %v481 = vld [vmem:[%s253 + $0x119] sm:$0xff]
      %v482 = vld [vmem:[%s253 + $0x121] sm:$0xff]
      %v483 = vld [vmem:[%s253 + $0x129] sm:$0xff]
      %v484 = vld [vmem:[%s253 + $0x131] sm:$0xff]
      %v485 = vld [vmem:[%s253 + $0x141] sm:$0xff]
      %v486 = vld [vmem:[%s253 + $0x149] sm:$0xff]
      %v487 = vld [vmem:[%s253 + $0x151] sm:$0xff]
      %v488 = vld [vmem:[%s253 + $0x159] sm:$0xff]
      %v489 = vld [vmem:[%s253 + $0x169] sm:$0xff]
      %v490 = vld [vmem:[%s253 + $0x171] sm:$0xff]
      %v491 = vld [vmem:[%s253 + $0x179] sm:$0xff]
      %v492 = vld [vmem:[%s253 + $0x181] sm:$0xff]
      %v493 = vld [vmem:[%s253 + $0x191] sm:$0xff]
      %v494 = vld [vmem:[%s253 + $0x199] sm:$0xff]
      %v495 = vld [vmem:[%s253 + $0x1a1] sm:$0xff]
      %v496 = vld [vmem:[%s253 + $0x1a9] sm:$0xff]
      %v497 = vld [vmem:[%s253 + $0x1b9] sm:$0xff]
      %v498 = vld [vmem:[%s253 + $0x1c1] sm:$0xff]
      %v499 = vld [vmem:[%s253 + $0x1c9] sm:$0xff]
      %v500 = vld [vmem:[%s253 + $0x1d1] sm:$0xff]
      %v501 = vld [vmem:[%s253 + $0x1e1] sm:$0xff]
      %v502 = vld [vmem:[%s253 + $0x1e9] sm:$0xff]
      %v503 = vld [vmem:[%s253 + $0x1f1] sm:$0xff]
      %v504 = vld [vmem:[%s253 + $0x1f9] sm:$0xff]
      %v505 = vld [vmem:[%s253 + $0x209] sm:$0xff]
      %v506 = vld [vmem:[%s253 + $0x211] sm:$0xff]
      %v507 = vld [vmem:[%s253 + $0x219] sm:$0xff]
      %v508 = vld [vmem:[%s253 + $0x221] sm:$0xff]
      %v509 = vld [vmem:[%s253 + $0x231] sm:$0xff]
      %v510 = vld [vmem:[%s253 + $0x239] sm:$0xff]
      %v511 = vld [vmem:[%s253 + $0x241] sm:$0xff]
      %v512 = vld [vmem:[%s253 + $0x249] sm:$0xff]
      %v513 = vld [vmem:[%s253 + $0x259] sm:$0xff]
      %v514 = vld [vmem:[%s253 + $0x261] sm:$0xff]
      %v515 = vld [vmem:[%s253 + $0x269] sm:$0xff]
      %v516 = vld [vmem:[%s253 + $0x271] sm:$0xff]
      %s517 = scalar_lea.vmem %s1, 1
      %v518 = vld [vmem:[%s517] sm:$0x1]
      %v520 = vlaneseq
      %v521 = vshrl.u32 %v520, 7
      %v522 = vsub.s32 0, %v521
      %v523 = vrot.slane %v518, %v522
      %v525 = vmul.f32 %v453, %v523
      %v526 = vmul.f32 %v454, %v523
      %v527 = vmul.f32 %v455, %v523
      %v528 = vmul.f32 %v456, %v523
      %v529 = vmul.f32 %v457, %v523
      %v530 = vmul.f32 %v458, %v523
      %v531 = vmul.f32 %v459, %v523
      %v532 = vmul.f32 %v460, %v523
      %v533 = vmul.f32 %v461, %v523
      %v534 = vmul.f32 %v462, %v523
      %v535 = vmul.f32 %v463, %v523
      %v536 = vmul.f32 %v464, %v523
      %v537 = vmul.f32 %v465, %v523
      %v538 = vmul.f32 %v466, %v523
      %v539 = vmul.f32 %v467, %v523
      %v540 = vmul.f32 %v468, %v523
      %v541 = vmul.f32 %v469, %v523
      %v542 = vmul.f32 %v470, %v523
      %v543 = vmul.f32 %v471, %v523
      %v544 = vmul.f32 %v472, %v523
      %v545 = vmul.f32 %v473, %v523
      %v546 = vmul.f32 %v474, %v523
      %v547 = vmul.f32 %v475, %v523
      %v548 = vmul.f32 %v476, %v523
      %v549 = vmul.f32 %v477, %v523
      %v550 = vmul.f32 %v478, %v523
      %v551 = vmul.f32 %v479, %v523
      %v552 = vmul.f32 %v480, %v523
      %v553 = vmul.f32 %v481, %v523
      %v554 = vmul.f32 %v482, %v523
      %v555 = vmul.f32 %v483, %v523
      %v556 = vmul.f32 %v484, %v523
      %v557 = vmul.f32 %v485, %v523
      %v558 = vmul.f32 %v486, %v523
      %v559 = vmul.f32 %v487, %v523
      %v560 = vmul.f32 %v488, %v523
      %v561 = vmul.f32 %v489, %v523
      %v562 = vmul.f32 %v490, %v523
      %v563 = vmul.f32 %v491, %v523
      %v564 = vmul.f32 %v492, %v523
      %v565 = vmul.f32 %v493, %v523
      %v566 = vmul.f32 %v494, %v523
      %v567 = vmul.f32 %v495, %v523
      %v568 = vmul.f32 %v496, %v523
      %v569 = vmul.f32 %v497, %v523
      %v570 = vmul.f32 %v498, %v523
      %v571 = vmul.f32 %v499, %v523
      %v572 = vmul.f32 %v500, %v523
      %v573 = vmul.f32 %v501, %v523
      %v574 = vmul.f32 %v502, %v523
      %v575 = vmul.f32 %v503, %v523
      %v576 = vmul.f32 %v504, %v523
      %v577 = vmul.f32 %v505, %v523
      %v578 = vmul.f32 %v506, %v523
      %v579 = vmul.f32 %v507, %v523
      %v580 = vmul.f32 %v508, %v523
      %v581 = vmul.f32 %v509, %v523
      %v582 = vmul.f32 %v510, %v523
      %v583 = vmul.f32 %v511, %v523
      %v584 = vmul.f32 %v512, %v523
      %v585 = vmul.f32 %v513, %v523
      %v586 = vmul.f32 %v514, %v523
      %v587 = vmul.f32 %v515, %v523
      %v588 = vmul.f32 %v516, %v523
      %v589 = vadd.f32 %v389, %v525
      %v590 = vadd.f32 %v390, %v526
      %v591 = vadd.f32 %v391, %v527
      %v592 = vadd.f32 %v392, %v528
      %v593 = vadd.f32 %v393, %v529
      %v594 = vadd.f32 %v394, %v530
      %v595 = vadd.f32 %v395, %v531
      %v596 = vadd.f32 %v396, %v532
      %v597 = vadd.f32 %v397, %v533
      %v598 = vadd.f32 %v398, %v534
      %v599 = vadd.f32 %v399, %v535
      %v600 = vadd.f32 %v400, %v536
      %v601 = vadd.f32 %v401, %v537
      %v602 = vadd.f32 %v402, %v538
      %v603 = vadd.f32 %v403, %v539
      %v604 = vadd.f32 %v404, %v540
      %v605 = vadd.f32 %v405, %v541
      %v606 = vadd.f32 %v406, %v542
      %v607 = vadd.f32 %v407, %v543
      %v608 = vadd.f32 %v408, %v544
      %v609 = vadd.f32 %v409, %v545
      %v610 = vadd.f32 %v410, %v546
      %v611 = vadd.f32 %v411, %v547
      %v612 = vadd.f32 %v412, %v548
      %v613 = vadd.f32 %v413, %v549
      %v614 = vadd.f32 %v414, %v550
      %v615 = vadd.f32 %v415, %v551
      %v616 = vadd.f32 %v416, %v552
      %v617 = vadd.f32 %v417, %v553
      %v618 = vadd.f32 %v418, %v554
      %v619 = vadd.f32 %v419, %v555
      %v620 = vadd.f32 %v420, %v556
      %v621 = vadd.f32 %v421, %v557
      %v622 = vadd.f32 %v422, %v558
      %v623 = vadd.f32 %v423, %v559
      %v624 = vadd.f32 %v424, %v560
      %v625 = vadd.f32 %v425, %v561
      %v626 = vadd.f32 %v426, %v562
      %v627 = vadd.f32 %v427, %v563
      %v628 = vadd.f32 %v428, %v564
      %v629 = vadd.f32 %v429, %v565
      %v630 = vadd.f32 %v430, %v566
      %v631 = vadd.f32 %v431, %v567
      %v632 = vadd.f32 %v432, %v568
      %v633 = vadd.f32 %v433, %v569
      %v634 = vadd.f32 %v434, %v570
      %v635 = vadd.f32 %v435, %v571
      %v636 = vadd.f32 %v436, %v572
      %v637 = vadd.f32 %v437, %v573
      %v638 = vadd.f32 %v438, %v574
      %v639 = vadd.f32 %v439, %v575
      %v640 = vadd.f32 %v440, %v576
      %v641 = vadd.f32 %v441, %v577
      %v642 = vadd.f32 %v442, %v578
      %v643 = vadd.f32 %v443, %v579
      %v644 = vadd.f32 %v444, %v580
      %v645 = vadd.f32 %v445, %v581
      %v646 = vadd.f32 %v446, %v582
      %v647 = vadd.f32 %v447, %v583
      %v648 = vadd.f32 %v448, %v584
      %v649 = vadd.f32 %v449, %v585
      %v650 = vadd.f32 %v450, %v586
      %v651 = vadd.f32 %v451, %v587
      %v652 = vadd.f32 %v452, %v588
      %v653 = vld [vmem:[%s253 + $0x2] sm:$0xff]
      %v654 = vld [vmem:[%s253 + $0xa] sm:$0xff]
      %v655 = vld [vmem:[%s253 + $0x12] sm:$0xff]
      %v656 = vld [vmem:[%s253 + $0x1a] sm:$0xff]
      %v657 = vld [vmem:[%s253 + $0x2a] sm:$0xff]
      %v658 = vld [vmem:[%s253 + $0x32] sm:$0xff]
      %v659 = vld [vmem:[%s253 + $0x3a] sm:$0xff]
      %v660 = vld [vmem:[%s253 + $0x42] sm:$0xff]
      %v661 = vld [vmem:[%s253 + $0x52] sm:$0xff]
      %v662 = vld [vmem:[%s253 + $0x5a] sm:$0xff]
      %v663 = vld [vmem:[%s253 + $0x62] sm:$0xff]
      %v664 = vld [vmem:[%s253 + $0x6a] sm:$0xff]
      %v665 = vld [vmem:[%s253 + $0x7a] sm:$0xff]
      %v666 = vld [vmem:[%s253 + $0x82] sm:$0xff]
      %v667 = vld [vmem:[%s253 + $0x8a] sm:$0xff]
      %v668 = vld [vmem:[%s253 + $0x92] sm:$0xff]
      %v669 = vld [vmem:[%s253 + $0xa2] sm:$0xff]
      %v670 = vld [vmem:[%s253 + $0xaa] sm:$0xff]
      %v671 = vld [vmem:[%s253 + $0xb2] sm:$0xff]
      %v672 = vld [vmem:[%s253 + $0xba] sm:$0xff]
      %v673 = vld [vmem:[%s253 + $0xca] sm:$0xff]
      %v674 = vld [vmem:[%s253 + $0xd2] sm:$0xff]
      %v675 = vld [vmem:[%s253 + $0xda] sm:$0xff]
      %v676 = vld [vmem:[%s253 + $0xe2] sm:$0xff]
      %v677 = vld [vmem:[%s253 + $0xf2] sm:$0xff]
      %v678 = vld [vmem:[%s253 + $0xfa] sm:$0xff]
      %v679 = vld [vmem:[%s253 + $0x102] sm:$0xff]
      %v680 = vld [vmem:[%s253 + $0x10a] sm:$0xff]
      %v681 = vld [vmem:[%s253 + $0x11a] sm:$0xff]
      %v682 = vld [vmem:[%s253 + $0x122] sm:$0xff]
      %v683 = vld [vmem:[%s253 + $0x12a] sm:$0xff]
      %v684 = vld [vmem:[%s253 + $0x132] sm:$0xff]
      %v685 = vld [vmem:[%s253 + $0x142] sm:$0xff]
      %v686 = vld [vmem:[%s253 + $0x14a] sm:$0xff]
      %v687 = vld [vmem:[%s253 + $0x152] sm:$0xff]
      %v688 = vld [vmem:[%s253 + $0x15a] sm:$0xff]
      %v689 = vld [vmem:[%s253 + $0x16a] sm:$0xff]
      %v690 = vld [vmem:[%s253 + $0x172] sm:$0xff]
      %v691 = vld [vmem:[%s253 + $0x17a] sm:$0xff]
      %v692 = vld [vmem:[%s253 + $0x182] sm:$0xff]
      %v693 = vld [vmem:[%s253 + $0x192] sm:$0xff]
      %v694 = vld [vmem:[%s253 + $0x19a] sm:$0xff]
      %v695 = vld [vmem:[%s253 + $0x1a2] sm:$0xff]
      %v696 = vld [vmem:[%s253 + $0x1aa] sm:$0xff]
      %v697 = vld [vmem:[%s253 + $0x1ba] sm:$0xff]
      %v698 = vld [vmem:[%s253 + $0x1c2] sm:$0xff]
      %v699 = vld [vmem:[%s253 + $0x1ca] sm:$0xff]
      %v700 = vld [vmem:[%s253 + $0x1d2] sm:$0xff]
      %v701 = vld [vmem:[%s253 + $0x1e2] sm:$0xff]
      %v702 = vld [vmem:[%s253 + $0x1ea] sm:$0xff]
      %v703 = vld [vmem:[%s253 + $0x1f2] sm:$0xff]
      %v704 = vld [vmem:[%s253 + $0x1fa] sm:$0xff]
      %v705 = vld [vmem:[%s253 + $0x20a] sm:$0xff]
      %v706 = vld [vmem:[%s253 + $0x212] sm:$0xff]
      %v707 = vld [vmem:[%s253 + $0x21a] sm:$0xff]
      %v708 = vld [vmem:[%s253 + $0x222] sm:$0xff]
      %v709 = vld [vmem:[%s253 + $0x232] sm:$0xff]
      %v710 = vld [vmem:[%s253 + $0x23a] sm:$0xff]
      %v711 = vld [vmem:[%s253 + $0x242] sm:$0xff]
      %v712 = vld [vmem:[%s253 + $0x24a] sm:$0xff]
      %v713 = vld [vmem:[%s253 + $0x25a] sm:$0xff]
      %v714 = vld [vmem:[%s253 + $0x262] sm:$0xff]
      %v715 = vld [vmem:[%s253 + $0x26a] sm:$0xff]
      %v716 = vld [vmem:[%s253 + $0x272] sm:$0xff]
      %s717 = scalar_lea.vmem %s1, 2
      %v718 = vld [vmem:[%s717] sm:$0x1]
      %v720 = vlaneseq
      %v721 = vshrl.u32 %v720, 7
      %v722 = vsub.s32 0, %v721
      %v723 = vrot.slane %v718, %v722
      %v725 = vmul.f32 %v653, %v723
      %v726 = vmul.f32 %v654, %v723
      %v727 = vmul.f32 %v655, %v723
      %v728 = vmul.f32 %v656, %v723
      %v729 = vmul.f32 %v657, %v723
      %v730 = vmul.f32 %v658, %v723
      %v731 = vmul.f32 %v659, %v723
      %v732 = vmul.f32 %v660, %v723
      %v733 = vmul.f32 %v661, %v723
      %v734 = vmul.f32 %v662, %v723
      %v735 = vmul.f32 %v663, %v723
      %v736 = vmul.f32 %v664, %v723
      %v737 = vmul.f32 %v665, %v723
      %v738 = vmul.f32 %v666, %v723
      %v739 = vmul.f32 %v667, %v723
      %v740 = vmul.f32 %v668, %v723
      %v741 = vmul.f32 %v669, %v723
      %v742 = vmul.f32 %v670, %v723
      %v743 = vmul.f32 %v671, %v723
      %v744 = vmul.f32 %v672, %v723
      %v745 = vmul.f32 %v673, %v723
      %v746 = vmul.f32 %v674, %v723
      %v747 = vmul.f32 %v675, %v723
      %v748 = vmul.f32 %v676, %v723
      %v749 = vmul.f32 %v677, %v723
      %v750 = vmul.f32 %v678, %v723
      %v751 = vmul.f32 %v679, %v723
      %v752 = vmul.f32 %v680, %v723
      %v753 = vmul.f32 %v681, %v723
      %v754 = vmul.f32 %v682, %v723
      %v755 = vmul.f32 %v683, %v723
      %v756 = vmul.f32 %v684, %v723
      %v757 = vmul.f32 %v685, %v723
      %v758 = vmul.f32 %v686, %v723
      %v759 = vmul.f32 %v687, %v723
      %v760 = vmul.f32 %v688, %v723
      %v761 = vmul.f32 %v689, %v723
      %v762 = vmul.f32 %v690, %v723
      %v763 = vmul.f32 %v691, %v723
      %v764 = vmul.f32 %v692, %v723
      %v765 = vmul.f32 %v693, %v723
      %v766 = vmul.f32 %v694, %v723
      %v767 = vmul.f32 %v695, %v723
      %v768 = vmul.f32 %v696, %v723
      %v769 = vmul.f32 %v697, %v723
      %v770 = vmul.f32 %v698, %v723
      %v771 = vmul.f32 %v699, %v723
      %v772 = vmul.f32 %v700, %v723
      %v773 = vmul.f32 %v701, %v723
      %v774 = vmul.f32 %v702, %v723
      %v775 = vmul.f32 %v703, %v723
      %v776 = vmul.f32 %v704, %v723
      %v777 = vmul.f32 %v705, %v723
      %v778 = vmul.f32 %v706, %v723
      %v779 = vmul.f32 %v707, %v723
      %v780 = vmul.f32 %v708, %v723
      %v781 = vmul.f32 %v709, %v723
      %v782 = vmul.f32 %v710, %v723
      %v783 = vmul.f32 %v711, %v723
      %v784 = vmul.f32 %v712, %v723
      %v785 = vmul.f32 %v713, %v723
      %v786 = vmul.f32 %v714, %v723
      %v787 = vmul.f32 %v715, %v723
      %v788 = vmul.f32 %v716, %v723
      %v789 = vadd.f32 %v589, %v725
      %v790 = vadd.f32 %v590, %v726
      %v791 = vadd.f32 %v591, %v727
      %v792 = vadd.f32 %v592, %v728
      %v793 = vadd.f32 %v593, %v729
      %v794 = vadd.f32 %v594, %v730
      %v795 = vadd.f32 %v595, %v731
      %v796 = vadd.f32 %v596, %v732
      %v797 = vadd.f32 %v597, %v733
      %v798 = vadd.f32 %v598, %v734
      %v799 = vadd.f32 %v599, %v735
      %v800 = vadd.f32 %v600, %v736
      %v801 = vadd.f32 %v601, %v737
      %v802 = vadd.f32 %v602, %v738
      %v803 = vadd.f32 %v603, %v739
      %v804 = vadd.f32 %v604, %v740
      %v805 = vadd.f32 %v605, %v741
      %v806 = vadd.f32 %v606, %v742
      %v807 = vadd.f32 %v607, %v743
      %v808 = vadd.f32 %v608, %v744
      %v809 = vadd.f32 %v609, %v745
      %v810 = vadd.f32 %v610, %v746
      %v811 = vadd.f32 %v611, %v747
      %v812 = vadd.f32 %v612, %v748
      %v813 = vadd.f32 %v613, %v749
      %v814 = vadd.f32 %v614, %v750
      %v815 = vadd.f32 %v615, %v751
      %v816 = vadd.f32 %v616, %v752
      %v817 = vadd.f32 %v617, %v753
      %v818 = vadd.f32 %v618, %v754
      %v819 = vadd.f32 %v619, %v755
      %v820 = vadd.f32 %v620, %v756
      %v821 = vadd.f32 %v621, %v757
      %v822 = vadd.f32 %v622, %v758
      %v823 = vadd.f32 %v623, %v759
      %v824 = vadd.f32 %v624, %v760
      %v825 = vadd.f32 %v625, %v761
      %v826 = vadd.f32 %v626, %v762
      %v827 = vadd.f32 %v627, %v763
      %v828 = vadd.f32 %v628, %v764
      %v829 = vadd.f32 %v629, %v765
      %v830 = vadd.f32 %v630, %v766
      %v831 = vadd.f32 %v631, %v767
      %v832 = vadd.f32 %v632, %v768
      %v833 = vadd.f32 %v633, %v769
      %v834 = vadd.f32 %v634, %v770
      %v835 = vadd.f32 %v635, %v771
      %v836 = vadd.f32 %v636, %v772
      %v837 = vadd.f32 %v637, %v773
      %v838 = vadd.f32 %v638, %v774
      %v839 = vadd.f32 %v639, %v775
      %v840 = vadd.f32 %v640, %v776
      %v841 = vadd.f32 %v641, %v777
      %v842 = vadd.f32 %v642, %v778
      %v843 = vadd.f32 %v643, %v779
      %v844 = vadd.f32 %v644, %v780
      %v845 = vadd.f32 %v645, %v781
      %v846 = vadd.f32 %v646, %v782
      %v847 = vadd.f32 %v647, %v783
      %v848 = vadd.f32 %v648, %v784
      %v849 = vadd.f32 %v649, %v785
      %v850 = vadd.f32 %v650, %v786
      %v851 = vadd.f32 %v651, %v787
      %v852 = vadd.f32 %v652, %v788
      %s853 = sadd.s32 %s251, 1
      %s854 = smul.u32 %s853, 40
      %s855 = scalar_lea.vmem %s238, %s854
      %v856 = vld [vmem:[%s855] sm:$0xff]
      %v857 = vld [vmem:[%s855 + $0x8] sm:$0xff]
      %v858 = vld [vmem:[%s855 + $0x10] sm:$0xff]
      %v859 = vld [vmem:[%s855 + $0x18] sm:$0xff]
      %v860 = vld [vmem:[%s855 + $0x28] sm:$0xff]
      %v861 = vld [vmem:[%s855 + $0x30] sm:$0xff]
      %v862 = vld [vmem:[%s855 + $0x38] sm:$0xff]
      %v863 = vld [vmem:[%s855 + $0x40] sm:$0xff]
      %v864 = vld [vmem:[%s855 + $0x50] sm:$0xff]
      %v865 = vld [vmem:[%s855 + $0x58] sm:$0xff]
      %v866 = vld [vmem:[%s855 + $0x60] sm:$0xff]
      %v867 = vld [vmem:[%s855 + $0x68] sm:$0xff]
      %v868 = vld [vmem:[%s855 + $0x78] sm:$0xff]
      %v869 = vld [vmem:[%s855 + $0x80] sm:$0xff]
      %v870 = vld [vmem:[%s855 + $0x88] sm:$0xff]
      %v871 = vld [vmem:[%s855 + $0x90] sm:$0xff]
      %v872 = vld [vmem:[%s855 + $0xa0] sm:$0xff]
      %v873 = vld [vmem:[%s855 + $0xa8] sm:$0xff]
      %v874 = vld [vmem:[%s855 + $0xb0] sm:$0xff]
      %v875 = vld [vmem:[%s855 + $0xb8] sm:$0xff]
      %v876 = vld [vmem:[%s855 + $0xc8] sm:$0xff]
      %v877 = vld [vmem:[%s855 + $0xd0] sm:$0xff]
      %v878 = vld [vmem:[%s855 + $0xd8] sm:$0xff]
      %v879 = vld [vmem:[%s855 + $0xe0] sm:$0xff]
      %v880 = vld [vmem:[%s855 + $0xf0] sm:$0xff]
      %v881 = vld [vmem:[%s855 + $0xf8] sm:$0xff]
      %v882 = vld [vmem:[%s855 + $0x100] sm:$0xff]
      %v883 = vld [vmem:[%s855 + $0x108] sm:$0xff]
      %v884 = vld [vmem:[%s855 + $0x118] sm:$0xff]
      %v885 = vld [vmem:[%s855 + $0x120] sm:$0xff]
      %v886 = vld [vmem:[%s855 + $0x128] sm:$0xff]
      %v887 = vld [vmem:[%s855 + $0x130] sm:$0xff]
      %v888 = vld [vmem:[%s855 + $0x140] sm:$0xff]
      %v889 = vld [vmem:[%s855 + $0x148] sm:$0xff]
      %v890 = vld [vmem:[%s855 + $0x150] sm:$0xff]
      %v891 = vld [vmem:[%s855 + $0x158] sm:$0xff]
      %v892 = vld [vmem:[%s855 + $0x168] sm:$0xff]
      %v893 = vld [vmem:[%s855 + $0x170] sm:$0xff]
      %v894 = vld [vmem:[%s855 + $0x178] sm:$0xff]
      %v895 = vld [vmem:[%s855 + $0x180] sm:$0xff]
      %v896 = vld [vmem:[%s855 + $0x190] sm:$0xff]
      %v897 = vld [vmem:[%s855 + $0x198] sm:$0xff]
      %v898 = vld [vmem:[%s855 + $0x1a0] sm:$0xff]
      %v899 = vld [vmem:[%s855 + $0x1a8] sm:$0xff]
      %v900 = vld [vmem:[%s855 + $0x1b8] sm:$0xff]
      %v901 = vld [vmem:[%s855 + $0x1c0] sm:$0xff]
      %v902 = vld [vmem:[%s855 + $0x1c8] sm:$0xff]
      %v903 = vld [vmem:[%s855 + $0x1d0] sm:$0xff]
      %v904 = vld [vmem:[%s855 + $0x1e0] sm:$0xff]
      %v905 = vld [vmem:[%s855 + $0x1e8] sm:$0xff]
      %v906 = vld [vmem:[%s855 + $0x1f0] sm:$0xff]
      %v907 = vld [vmem:[%s855 + $0x1f8] sm:$0xff]
      %v908 = vld [vmem:[%s855 + $0x208] sm:$0xff]
      %v909 = vld [vmem:[%s855 + $0x210] sm:$0xff]
      %v910 = vld [vmem:[%s855 + $0x218] sm:$0xff]
      %v911 = vld [vmem:[%s855 + $0x220] sm:$0xff]
      %v912 = vld [vmem:[%s855 + $0x230] sm:$0xff]
      %v913 = vld [vmem:[%s855 + $0x238] sm:$0xff]
      %v914 = vld [vmem:[%s855 + $0x240] sm:$0xff]
      %v915 = vld [vmem:[%s855 + $0x248] sm:$0xff]
      %v916 = vld [vmem:[%s855 + $0x258] sm:$0xff]
      %v917 = vld [vmem:[%s855 + $0x260] sm:$0xff]
      %v918 = vld [vmem:[%s855 + $0x268] sm:$0xff]
      %v919 = vld [vmem:[%s855 + $0x270] sm:$0xff]
      %s920 = scalar_lea.vmem %s1, 3
      %v921 = vld [vmem:[%s920] sm:$0x1]
      %v923 = vlaneseq
      %v924 = vshrl.u32 %v923, 7
      %v925 = vsub.s32 0, %v924
      %v926 = vrot.slane %v921, %v925
      %v928 = vmul.f32 %v856, %v926
      %v929 = vmul.f32 %v857, %v926
      %v930 = vmul.f32 %v858, %v926
      %v931 = vmul.f32 %v859, %v926
      %v932 = vmul.f32 %v860, %v926
      %v933 = vmul.f32 %v861, %v926
      %v934 = vmul.f32 %v862, %v926
      %v935 = vmul.f32 %v863, %v926
      %v936 = vmul.f32 %v864, %v926
      %v937 = vmul.f32 %v865, %v926
      %v938 = vmul.f32 %v866, %v926
      %v939 = vmul.f32 %v867, %v926
      %v940 = vmul.f32 %v868, %v926
      %v941 = vmul.f32 %v869, %v926
      %v942 = vmul.f32 %v870, %v926
      %v943 = vmul.f32 %v871, %v926
      %v944 = vmul.f32 %v872, %v926
      %v945 = vmul.f32 %v873, %v926
      %v946 = vmul.f32 %v874, %v926
      %v947 = vmul.f32 %v875, %v926
      %v948 = vmul.f32 %v876, %v926
      %v949 = vmul.f32 %v877, %v926
      %v950 = vmul.f32 %v878, %v926
      %v951 = vmul.f32 %v879, %v926
      %v952 = vmul.f32 %v880, %v926
      %v953 = vmul.f32 %v881, %v926
      %v954 = vmul.f32 %v882, %v926
      %v955 = vmul.f32 %v883, %v926
      %v956 = vmul.f32 %v884, %v926
      %v957 = vmul.f32 %v885, %v926
      %v958 = vmul.f32 %v886, %v926
      %v959 = vmul.f32 %v887, %v926
      %v960 = vmul.f32 %v888, %v926
      %v961 = vmul.f32 %v889, %v926
      %v962 = vmul.f32 %v890, %v926
      %v963 = vmul.f32 %v891, %v926
      %v964 = vmul.f32 %v892, %v926
      %v965 = vmul.f32 %v893, %v926
      %v966 = vmul.f32 %v894, %v926
      %v967 = vmul.f32 %v895, %v926
      %v968 = vmul.f32 %v896, %v926
      %v969 = vmul.f32 %v897, %v926
      %v970 = vmul.f32 %v898, %v926
      %v971 = vmul.f32 %v899, %v926
      %v972 = vmul.f32 %v900, %v926
      %v973 = vmul.f32 %v901, %v926
      %v974 = vmul.f32 %v902, %v926
      %v975 = vmul.f32 %v903, %v926
      %v976 = vmul.f32 %v904, %v926
      %v977 = vmul.f32 %v905, %v926
      %v978 = vmul.f32 %v906, %v926
      %v979 = vmul.f32 %v907, %v926
      %v980 = vmul.f32 %v908, %v926
      %v981 = vmul.f32 %v909, %v926
      %v982 = vmul.f32 %v910, %v926
      %v983 = vmul.f32 %v911, %v926
      %v984 = vmul.f32 %v912, %v926
      %v985 = vmul.f32 %v913, %v926
      %v986 = vmul.f32 %v914, %v926
      %v987 = vmul.f32 %v915, %v926
      %v988 = vmul.f32 %v916, %v926
      %v989 = vmul.f32 %v917, %v926
      %v990 = vmul.f32 %v918, %v926
      %v991 = vmul.f32 %v919, %v926
      %v992 = vadd.f32 %v789, %v928
      %v993 = vadd.f32 %v790, %v929
      %v994 = vadd.f32 %v791, %v930
      %v995 = vadd.f32 %v792, %v931
      %v996 = vadd.f32 %v793, %v932
      %v997 = vadd.f32 %v794, %v933
      %v998 = vadd.f32 %v795, %v934
      %v999 = vadd.f32 %v796, %v935
      %v1000 = vadd.f32 %v797, %v936
      %v1001 = vadd.f32 %v798, %v937
      %v1002 = vadd.f32 %v799, %v938
      %v1003 = vadd.f32 %v800, %v939
      %v1004 = vadd.f32 %v801, %v940
      %v1005 = vadd.f32 %v802, %v941
      %v1006 = vadd.f32 %v803, %v942
      %v1007 = vadd.f32 %v804, %v943
      %v1008 = vadd.f32 %v805, %v944
      %v1009 = vadd.f32 %v806, %v945
      %v1010 = vadd.f32 %v807, %v946
      %v1011 = vadd.f32 %v808, %v947
      %v1012 = vadd.f32 %v809, %v948
      %v1013 = vadd.f32 %v810, %v949
      %v1014 = vadd.f32 %v811, %v950
      %v1015 = vadd.f32 %v812, %v951
      %v1016 = vadd.f32 %v813, %v952
      %v1017 = vadd.f32 %v814, %v953
      %v1018 = vadd.f32 %v815, %v954
      %v1019 = vadd.f32 %v816, %v955
      %v1020 = vadd.f32 %v817, %v956
      %v1021 = vadd.f32 %v818, %v957
      %v1022 = vadd.f32 %v819, %v958
      %v1023 = vadd.f32 %v820, %v959
      %v1024 = vadd.f32 %v821, %v960
      %v1025 = vadd.f32 %v822, %v961
      %v1026 = vadd.f32 %v823, %v962
      %v1027 = vadd.f32 %v824, %v963
      %v1028 = vadd.f32 %v825, %v964
      %v1029 = vadd.f32 %v826, %v965
      %v1030 = vadd.f32 %v827, %v966
      %v1031 = vadd.f32 %v828, %v967
      %v1032 = vadd.f32 %v829, %v968
      %v1033 = vadd.f32 %v830, %v969
      %v1034 = vadd.f32 %v831, %v970
      %v1035 = vadd.f32 %v832, %v971
      %v1036 = vadd.f32 %v833, %v972
      %v1037 = vadd.f32 %v834, %v973
      %v1038 = vadd.f32 %v835, %v974
      %v1039 = vadd.f32 %v836, %v975
      %v1040 = vadd.f32 %v837, %v976
      %v1041 = vadd.f32 %v838, %v977
      %v1042 = vadd.f32 %v839, %v978
      %v1043 = vadd.f32 %v840, %v979
      %v1044 = vadd.f32 %v841, %v980
      %v1045 = vadd.f32 %v842, %v981
      %v1046 = vadd.f32 %v843, %v982
      %v1047 = vadd.f32 %v844, %v983
      %v1048 = vadd.f32 %v845, %v984
      %v1049 = vadd.f32 %v846, %v985
      %v1050 = vadd.f32 %v847, %v986
      %v1051 = vadd.f32 %v848, %v987
      %v1052 = vadd.f32 %v849, %v988
      %v1053 = vadd.f32 %v850, %v989
      %v1054 = vadd.f32 %v851, %v990
      %v1055 = vadd.f32 %v852, %v991
      %v1056 = vld [vmem:[%s855 + $0x1] sm:$0xff]
      %v1057 = vld [vmem:[%s855 + $0x9] sm:$0xff]
      %v1058 = vld [vmem:[%s855 + $0x11] sm:$0xff]
      %v1059 = vld [vmem:[%s855 + $0x19] sm:$0xff]
      %v1060 = vld [vmem:[%s855 + $0x29] sm:$0xff]
      %v1061 = vld [vmem:[%s855 + $0x31] sm:$0xff]
      %v1062 = vld [vmem:[%s855 + $0x39] sm:$0xff]
      %v1063 = vld [vmem:[%s855 + $0x41] sm:$0xff]
      %v1064 = vld [vmem:[%s855 + $0x51] sm:$0xff]
      %v1065 = vld [vmem:[%s855 + $0x59] sm:$0xff]
      %v1066 = vld [vmem:[%s855 + $0x61] sm:$0xff]
      %v1067 = vld [vmem:[%s855 + $0x69] sm:$0xff]
      %v1068 = vld [vmem:[%s855 + $0x79] sm:$0xff]
      %v1069 = vld [vmem:[%s855 + $0x81] sm:$0xff]
      %v1070 = vld [vmem:[%s855 + $0x89] sm:$0xff]
      %v1071 = vld [vmem:[%s855 + $0x91] sm:$0xff]
      %v1072 = vld [vmem:[%s855 + $0xa1] sm:$0xff]
      %v1073 = vld [vmem:[%s855 + $0xa9] sm:$0xff]
      %v1074 = vld [vmem:[%s855 + $0xb1] sm:$0xff]
      %v1075 = vld [vmem:[%s855 + $0xb9] sm:$0xff]
      %v1076 = vld [vmem:[%s855 + $0xc9] sm:$0xff]
      %v1077 = vld [vmem:[%s855 + $0xd1] sm:$0xff]
      %v1078 = vld [vmem:[%s855 + $0xd9] sm:$0xff]
      %v1079 = vld [vmem:[%s855 + $0xe1] sm:$0xff]
      %v1080 = vld [vmem:[%s855 + $0xf1] sm:$0xff]
      %v1081 = vld [vmem:[%s855 + $0xf9] sm:$0xff]
      %v1082 = vld [vmem:[%s855 + $0x101] sm:$0xff]
      %v1083 = vld [vmem:[%s855 + $0x109] sm:$0xff]
      %v1084 = vld [vmem:[%s855 + $0x119] sm:$0xff]
      %v1085 = vld [vmem:[%s855 + $0x121] sm:$0xff]
      %v1086 = vld [vmem:[%s855 + $0x129] sm:$0xff]
      %v1087 = vld [vmem:[%s855 + $0x131] sm:$0xff]
      %v1088 = vld [vmem:[%s855 + $0x141] sm:$0xff]
      %v1089 = vld [vmem:[%s855 + $0x149] sm:$0xff]
      %v1090 = vld [vmem:[%s855 + $0x151] sm:$0xff]
      %v1091 = vld [vmem:[%s855 + $0x159] sm:$0xff]
      %v1092 = vld [vmem:[%s855 + $0x169] sm:$0xff]
      %v1093 = vld [vmem:[%s855 + $0x171] sm:$0xff]
      %v1094 = vld [vmem:[%s855 + $0x179] sm:$0xff]
      %v1095 = vld [vmem:[%s855 + $0x181] sm:$0xff]
      %v1096 = vld [vmem:[%s855 + $0x191] sm:$0xff]
      %v1097 = vld [vmem:[%s855 + $0x199] sm:$0xff]
      %v1098 = vld [vmem:[%s855 + $0x1a1] sm:$0xff]
      %v1099 = vld [vmem:[%s855 + $0x1a9] sm:$0xff]
      %v1100 = vld [vmem:[%s855 + $0x1b9] sm:$0xff]
      %v1101 = vld [vmem:[%s855 + $0x1c1] sm:$0xff]
      %v1102 = vld [vmem:[%s855 + $0x1c9] sm:$0xff]
      %v1103 = vld [vmem:[%s855 + $0x1d1] sm:$0xff]
      %v1104 = vld [vmem:[%s855 + $0x1e1] sm:$0xff]
      %v1105 = vld [vmem:[%s855 + $0x1e9] sm:$0xff]
      %v1106 = vld [vmem:[%s855 + $0x1f1] sm:$0xff]
      %v1107 = vld [vmem:[%s855 + $0x1f9] sm:$0xff]
      %v1108 = vld [vmem:[%s855 + $0x209] sm:$0xff]
      %v1109 = vld [vmem:[%s855 + $0x211] sm:$0xff]
      %v1110 = vld [vmem:[%s855 + $0x219] sm:$0xff]
      %v1111 = vld [vmem:[%s855 + $0x221] sm:$0xff]
      %v1112 = vld [vmem:[%s855 + $0x231] sm:$0xff]
      %v1113 = vld [vmem:[%s855 + $0x239] sm:$0xff]
      %v1114 = vld [vmem:[%s855 + $0x241] sm:$0xff]
      %v1115 = vld [vmem:[%s855 + $0x249] sm:$0xff]
      %v1116 = vld [vmem:[%s855 + $0x259] sm:$0xff]
      %v1117 = vld [vmem:[%s855 + $0x261] sm:$0xff]
      %v1118 = vld [vmem:[%s855 + $0x269] sm:$0xff]
      %v1119 = vld [vmem:[%s855 + $0x271] sm:$0xff]
      %s1120 = scalar_lea.vmem %s1, 4
      %v1121 = vld [vmem:[%s1120] sm:$0x1]
      %v1123 = vlaneseq
      %v1124 = vshrl.u32 %v1123, 7
      %v1125 = vsub.s32 0, %v1124
      %v1126 = vrot.slane %v1121, %v1125
      %v1128 = vmul.f32 %v1056, %v1126
      %v1129 = vmul.f32 %v1057, %v1126
      %v1130 = vmul.f32 %v1058, %v1126
      %v1131 = vmul.f32 %v1059, %v1126
      %v1132 = vmul.f32 %v1060, %v1126
      %v1133 = vmul.f32 %v1061, %v1126
      %v1134 = vmul.f32 %v1062, %v1126
      %v1135 = vmul.f32 %v1063, %v1126
      %v1136 = vmul.f32 %v1064, %v1126
      %v1137 = vmul.f32 %v1065, %v1126
      %v1138 = vmul.f32 %v1066, %v1126
      %v1139 = vmul.f32 %v1067, %v1126
      %v1140 = vmul.f32 %v1068, %v1126
      %v1141 = vmul.f32 %v1069, %v1126
      %v1142 = vmul.f32 %v1070, %v1126
      %v1143 = vmul.f32 %v1071, %v1126
      %v1144 = vmul.f32 %v1072, %v1126
      %v1145 = vmul.f32 %v1073, %v1126
      %v1146 = vmul.f32 %v1074, %v1126
      %v1147 = vmul.f32 %v1075, %v1126
      %v1148 = vmul.f32 %v1076, %v1126
      %v1149 = vmul.f32 %v1077, %v1126
      %v1150 = vmul.f32 %v1078, %v1126
      %v1151 = vmul.f32 %v1079, %v1126
      %v1152 = vmul.f32 %v1080, %v1126
      %v1153 = vmul.f32 %v1081, %v1126
      %v1154 = vmul.f32 %v1082, %v1126
      %v1155 = vmul.f32 %v1083, %v1126
      %v1156 = vmul.f32 %v1084, %v1126
      %v1157 = vmul.f32 %v1085, %v1126
      %v1158 = vmul.f32 %v1086, %v1126
      %v1159 = vmul.f32 %v1087, %v1126
      %v1160 = vmul.f32 %v1088, %v1126
      %v1161 = vmul.f32 %v1089, %v1126
      %v1162 = vmul.f32 %v1090, %v1126
      %v1163 = vmul.f32 %v1091, %v1126
      %v1164 = vmul.f32 %v1092, %v1126
      %v1165 = vmul.f32 %v1093, %v1126
      %v1166 = vmul.f32 %v1094, %v1126
      %v1167 = vmul.f32 %v1095, %v1126
      %v1168 = vmul.f32 %v1096, %v1126
      %v1169 = vmul.f32 %v1097, %v1126
      %v1170 = vmul.f32 %v1098, %v1126
      %v1171 = vmul.f32 %v1099, %v1126
      %v1172 = vmul.f32 %v1100, %v1126
      %v1173 = vmul.f32 %v1101, %v1126
      %v1174 = vmul.f32 %v1102, %v1126
      %v1175 = vmul.f32 %v1103, %v1126
      %v1176 = vmul.f32 %v1104, %v1126
      %v1177 = vmul.f32 %v1105, %v1126
      %v1178 = vmul.f32 %v1106, %v1126
      %v1179 = vmul.f32 %v1107, %v1126
      %v1180 = vmul.f32 %v1108, %v1126
      %v1181 = vmul.f32 %v1109, %v1126
      %v1182 = vmul.f32 %v1110, %v1126
      %v1183 = vmul.f32 %v1111, %v1126
      %v1184 = vmul.f32 %v1112, %v1126
      %v1185 = vmul.f32 %v1113, %v1126
      %v1186 = vmul.f32 %v1114, %v1126
      %v1187 = vmul.f32 %v1115, %v1126
      %v1188 = vmul.f32 %v1116, %v1126
      %v1189 = vmul.f32 %v1117, %v1126
      %v1190 = vmul.f32 %v1118, %v1126
      %v1191 = vmul.f32 %v1119, %v1126
      %v1192 = vadd.f32 %v992, %v1128
      %v1193 = vadd.f32 %v993, %v1129
      %v1194 = vadd.f32 %v994, %v1130
      %v1195 = vadd.f32 %v995, %v1131
      %v1196 = vadd.f32 %v996, %v1132
      %v1197 = vadd.f32 %v997, %v1133
      %v1198 = vadd.f32 %v998, %v1134
      %v1199 = vadd.f32 %v999, %v1135
      %v1200 = vadd.f32 %v1000, %v1136
      %v1201 = vadd.f32 %v1001, %v1137
      %v1202 = vadd.f32 %v1002, %v1138
      %v1203 = vadd.f32 %v1003, %v1139
      %v1204 = vadd.f32 %v1004, %v1140
      %v1205 = vadd.f32 %v1005, %v1141
      %v1206 = vadd.f32 %v1006, %v1142
      %v1207 = vadd.f32 %v1007, %v1143
      %v1208 = vadd.f32 %v1008, %v1144
      %v1209 = vadd.f32 %v1009, %v1145
      %v1210 = vadd.f32 %v1010, %v1146
      %v1211 = vadd.f32 %v1011, %v1147
      %v1212 = vadd.f32 %v1012, %v1148
      %v1213 = vadd.f32 %v1013, %v1149
      %v1214 = vadd.f32 %v1014, %v1150
      %v1215 = vadd.f32 %v1015, %v1151
      %v1216 = vadd.f32 %v1016, %v1152
      %v1217 = vadd.f32 %v1017, %v1153
      %v1218 = vadd.f32 %v1018, %v1154
      %v1219 = vadd.f32 %v1019, %v1155
      %v1220 = vadd.f32 %v1020, %v1156
      %v1221 = vadd.f32 %v1021, %v1157
      %v1222 = vadd.f32 %v1022, %v1158
      %v1223 = vadd.f32 %v1023, %v1159
      %v1224 = vadd.f32 %v1024, %v1160
      %v1225 = vadd.f32 %v1025, %v1161
      %v1226 = vadd.f32 %v1026, %v1162
      %v1227 = vadd.f32 %v1027, %v1163
      %v1228 = vadd.f32 %v1028, %v1164
      %v1229 = vadd.f32 %v1029, %v1165
      %v1230 = vadd.f32 %v1030, %v1166
      %v1231 = vadd.f32 %v1031, %v1167
      %v1232 = vadd.f32 %v1032, %v1168
      %v1233 = vadd.f32 %v1033, %v1169
      %v1234 = vadd.f32 %v1034, %v1170
      %v1235 = vadd.f32 %v1035, %v1171
      %v1236 = vadd.f32 %v1036, %v1172
      %v1237 = vadd.f32 %v1037, %v1173
      %v1238 = vadd.f32 %v1038, %v1174
      %v1239 = vadd.f32 %v1039, %v1175
      %v1240 = vadd.f32 %v1040, %v1176
      %v1241 = vadd.f32 %v1041, %v1177
      %v1242 = vadd.f32 %v1042, %v1178
      %v1243 = vadd.f32 %v1043, %v1179
      %v1244 = vadd.f32 %v1044, %v1180
      %v1245 = vadd.f32 %v1045, %v1181
      %v1246 = vadd.f32 %v1046, %v1182
      %v1247 = vadd.f32 %v1047, %v1183
      %v1248 = vadd.f32 %v1048, %v1184
      %v1249 = vadd.f32 %v1049, %v1185
      %v1250 = vadd.f32 %v1050, %v1186
      %v1251 = vadd.f32 %v1051, %v1187
      %v1252 = vadd.f32 %v1052, %v1188
      %v1253 = vadd.f32 %v1053, %v1189
      %v1254 = vadd.f32 %v1054, %v1190
      %v1255 = vadd.f32 %v1055, %v1191
      %v1256 = vld [vmem:[%s855 + $0x2] sm:$0xff]
      %v1257 = vld [vmem:[%s855 + $0xa] sm:$0xff]
      %v1258 = vld [vmem:[%s855 + $0x12] sm:$0xff]
      %v1259 = vld [vmem:[%s855 + $0x1a] sm:$0xff]
      %v1260 = vld [vmem:[%s855 + $0x2a] sm:$0xff]
      %v1261 = vld [vmem:[%s855 + $0x32] sm:$0xff]
      %v1262 = vld [vmem:[%s855 + $0x3a] sm:$0xff]
      %v1263 = vld [vmem:[%s855 + $0x42] sm:$0xff]
      %v1264 = vld [vmem:[%s855 + $0x52] sm:$0xff]
      %v1265 = vld [vmem:[%s855 + $0x5a] sm:$0xff]
      %v1266 = vld [vmem:[%s855 + $0x62] sm:$0xff]
      %v1267 = vld [vmem:[%s855 + $0x6a] sm:$0xff]
      %v1268 = vld [vmem:[%s855 + $0x7a] sm:$0xff]
      %v1269 = vld [vmem:[%s855 + $0x82] sm:$0xff]
      %v1270 = vld [vmem:[%s855 + $0x8a] sm:$0xff]
      %v1271 = vld [vmem:[%s855 + $0x92] sm:$0xff]
      %v1272 = vld [vmem:[%s855 + $0xa2] sm:$0xff]
      %v1273 = vld [vmem:[%s855 + $0xaa] sm:$0xff]
      %v1274 = vld [vmem:[%s855 + $0xb2] sm:$0xff]
      %v1275 = vld [vmem:[%s855 + $0xba] sm:$0xff]
      %v1276 = vld [vmem:[%s855 + $0xca] sm:$0xff]
      %v1277 = vld [vmem:[%s855 + $0xd2] sm:$0xff]
      %v1278 = vld [vmem:[%s855 + $0xda] sm:$0xff]
      %v1279 = vld [vmem:[%s855 + $0xe2] sm:$0xff]
      %v1280 = vld [vmem:[%s855 + $0xf2] sm:$0xff]
      %v1281 = vld [vmem:[%s855 + $0xfa] sm:$0xff]
      %v1282 = vld [vmem:[%s855 + $0x102] sm:$0xff]
      %v1283 = vld [vmem:[%s855 + $0x10a] sm:$0xff]
      %v1284 = vld [vmem:[%s855 + $0x11a] sm:$0xff]
      %v1285 = vld [vmem:[%s855 + $0x122] sm:$0xff]
      %v1286 = vld [vmem:[%s855 + $0x12a] sm:$0xff]
      %v1287 = vld [vmem:[%s855 + $0x132] sm:$0xff]
      %v1288 = vld [vmem:[%s855 + $0x142] sm:$0xff]
      %v1289 = vld [vmem:[%s855 + $0x14a] sm:$0xff]
      %v1290 = vld [vmem:[%s855 + $0x152] sm:$0xff]
      %v1291 = vld [vmem:[%s855 + $0x15a] sm:$0xff]
      %v1292 = vld [vmem:[%s855 + $0x16a] sm:$0xff]
      %v1293 = vld [vmem:[%s855 + $0x172] sm:$0xff]
      %v1294 = vld [vmem:[%s855 + $0x17a] sm:$0xff]
      %v1295 = vld [vmem:[%s855 + $0x182] sm:$0xff]
      %v1296 = vld [vmem:[%s855 + $0x192] sm:$0xff]
      %v1297 = vld [vmem:[%s855 + $0x19a] sm:$0xff]
      %v1298 = vld [vmem:[%s855 + $0x1a2] sm:$0xff]
      %v1299 = vld [vmem:[%s855 + $0x1aa] sm:$0xff]
      %v1300 = vld [vmem:[%s855 + $0x1ba] sm:$0xff]
      %v1301 = vld [vmem:[%s855 + $0x1c2] sm:$0xff]
      %v1302 = vld [vmem:[%s855 + $0x1ca] sm:$0xff]
      %v1303 = vld [vmem:[%s855 + $0x1d2] sm:$0xff]
      %v1304 = vld [vmem:[%s855 + $0x1e2] sm:$0xff]
      %v1305 = vld [vmem:[%s855 + $0x1ea] sm:$0xff]
      %v1306 = vld [vmem:[%s855 + $0x1f2] sm:$0xff]
      %v1307 = vld [vmem:[%s855 + $0x1fa] sm:$0xff]
      %v1308 = vld [vmem:[%s855 + $0x20a] sm:$0xff]
      %v1309 = vld [vmem:[%s855 + $0x212] sm:$0xff]
      %v1310 = vld [vmem:[%s855 + $0x21a] sm:$0xff]
      %v1311 = vld [vmem:[%s855 + $0x222] sm:$0xff]
      %v1312 = vld [vmem:[%s855 + $0x232] sm:$0xff]
      %v1313 = vld [vmem:[%s855 + $0x23a] sm:$0xff]
      %v1314 = vld [vmem:[%s855 + $0x242] sm:$0xff]
      %v1315 = vld [vmem:[%s855 + $0x24a] sm:$0xff]
      %v1316 = vld [vmem:[%s855 + $0x25a] sm:$0xff]
      %v1317 = vld [vmem:[%s855 + $0x262] sm:$0xff]
      %v1318 = vld [vmem:[%s855 + $0x26a] sm:$0xff]
      %v1319 = vld [vmem:[%s855 + $0x272] sm:$0xff]
      %s1320 = scalar_lea.vmem %s1, 5
      %v1321 = vld [vmem:[%s1320] sm:$0x1]
      %v1323 = vlaneseq
      %v1324 = vshrl.u32 %v1323, 7
      %v1325 = vsub.s32 0, %v1324
      %v1326 = vrot.slane %v1321, %v1325
      %v1328 = vmul.f32 %v1256, %v1326
      %v1329 = vmul.f32 %v1257, %v1326
      %v1330 = vmul.f32 %v1258, %v1326
      %v1331 = vmul.f32 %v1259, %v1326
      %v1332 = vmul.f32 %v1260, %v1326
      %v1333 = vmul.f32 %v1261, %v1326
      %v1334 = vmul.f32 %v1262, %v1326
      %v1335 = vmul.f32 %v1263, %v1326
      %v1336 = vmul.f32 %v1264, %v1326
      %v1337 = vmul.f32 %v1265, %v1326
      %v1338 = vmul.f32 %v1266, %v1326
      %v1339 = vmul.f32 %v1267, %v1326
      %v1340 = vmul.f32 %v1268, %v1326
      %v1341 = vmul.f32 %v1269, %v1326
      %v1342 = vmul.f32 %v1270, %v1326
      %v1343 = vmul.f32 %v1271, %v1326
      %v1344 = vmul.f32 %v1272, %v1326
      %v1345 = vmul.f32 %v1273, %v1326
      %v1346 = vmul.f32 %v1274, %v1326
      %v1347 = vmul.f32 %v1275, %v1326
      %v1348 = vmul.f32 %v1276, %v1326
      %v1349 = vmul.f32 %v1277, %v1326
      %v1350 = vmul.f32 %v1278, %v1326
      %v1351 = vmul.f32 %v1279, %v1326
      %v1352 = vmul.f32 %v1280, %v1326
      %v1353 = vmul.f32 %v1281, %v1326
      %v1354 = vmul.f32 %v1282, %v1326
      %v1355 = vmul.f32 %v1283, %v1326
      %v1356 = vmul.f32 %v1284, %v1326
      %v1357 = vmul.f32 %v1285, %v1326
      %v1358 = vmul.f32 %v1286, %v1326
      %v1359 = vmul.f32 %v1287, %v1326
      %v1360 = vmul.f32 %v1288, %v1326
      %v1361 = vmul.f32 %v1289, %v1326
      %v1362 = vmul.f32 %v1290, %v1326
      %v1363 = vmul.f32 %v1291, %v1326
      %v1364 = vmul.f32 %v1292, %v1326
      %v1365 = vmul.f32 %v1293, %v1326
      %v1366 = vmul.f32 %v1294, %v1326
      %v1367 = vmul.f32 %v1295, %v1326
      %v1368 = vmul.f32 %v1296, %v1326
      %v1369 = vmul.f32 %v1297, %v1326
      %v1370 = vmul.f32 %v1298, %v1326
      %v1371 = vmul.f32 %v1299, %v1326
      %v1372 = vmul.f32 %v1300, %v1326
      %v1373 = vmul.f32 %v1301, %v1326
      %v1374 = vmul.f32 %v1302, %v1326
      %v1375 = vmul.f32 %v1303, %v1326
      %v1376 = vmul.f32 %v1304, %v1326
      %v1377 = vmul.f32 %v1305, %v1326
      %v1378 = vmul.f32 %v1306, %v1326
      %v1379 = vmul.f32 %v1307, %v1326
      %v1380 = vmul.f32 %v1308, %v1326
      %v1381 = vmul.f32 %v1309, %v1326
      %v1382 = vmul.f32 %v1310, %v1326
      %v1383 = vmul.f32 %v1311, %v1326
      %v1384 = vmul.f32 %v1312, %v1326
      %v1385 = vmul.f32 %v1313, %v1326
      %v1386 = vmul.f32 %v1314, %v1326
      %v1387 = vmul.f32 %v1315, %v1326
      %v1388 = vmul.f32 %v1316, %v1326
      %v1389 = vmul.f32 %v1317, %v1326
      %v1390 = vmul.f32 %v1318, %v1326
      %v1391 = vmul.f32 %v1319, %v1326
      %v1392 = vadd.f32 %v1192, %v1328
      %v1393 = vadd.f32 %v1193, %v1329
      %v1394 = vadd.f32 %v1194, %v1330
      %v1395 = vadd.f32 %v1195, %v1331
      %v1396 = vadd.f32 %v1196, %v1332
      %v1397 = vadd.f32 %v1197, %v1333
      %v1398 = vadd.f32 %v1198, %v1334
      %v1399 = vadd.f32 %v1199, %v1335
      %v1400 = vadd.f32 %v1200, %v1336
      %v1401 = vadd.f32 %v1201, %v1337
      %v1402 = vadd.f32 %v1202, %v1338
      %v1403 = vadd.f32 %v1203, %v1339
      %v1404 = vadd.f32 %v1204, %v1340
      %v1405 = vadd.f32 %v1205, %v1341
      %v1406 = vadd.f32 %v1206, %v1342
      %v1407 = vadd.f32 %v1207, %v1343
      %v1408 = vadd.f32 %v1208, %v1344
      %v1409 = vadd.f32 %v1209, %v1345
      %v1410 = vadd.f32 %v1210, %v1346
      %v1411 = vadd.f32 %v1211, %v1347
      %v1412 = vadd.f32 %v1212, %v1348
      %v1413 = vadd.f32 %v1213, %v1349
      %v1414 = vadd.f32 %v1214, %v1350
      %v1415 = vadd.f32 %v1215, %v1351
      %v1416 = vadd.f32 %v1216, %v1352
      %v1417 = vadd.f32 %v1217, %v1353
      %v1418 = vadd.f32 %v1218, %v1354
      %v1419 = vadd.f32 %v1219, %v1355
      %v1420 = vadd.f32 %v1220, %v1356
      %v1421 = vadd.f32 %v1221, %v1357
      %v1422 = vadd.f32 %v1222, %v1358
      %v1423 = vadd.f32 %v1223, %v1359
      %v1424 = vadd.f32 %v1224, %v1360
      %v1425 = vadd.f32 %v1225, %v1361
      %v1426 = vadd.f32 %v1226, %v1362
      %v1427 = vadd.f32 %v1227, %v1363
      %v1428 = vadd.f32 %v1228, %v1364
      %v1429 = vadd.f32 %v1229, %v1365
      %v1430 = vadd.f32 %v1230, %v1366
      %v1431 = vadd.f32 %v1231, %v1367
      %v1432 = vadd.f32 %v1232, %v1368
      %v1433 = vadd.f32 %v1233, %v1369
      %v1434 = vadd.f32 %v1234, %v1370
      %v1435 = vadd.f32 %v1235, %v1371
      %v1436 = vadd.f32 %v1236, %v1372
      %v1437 = vadd.f32 %v1237, %v1373
      %v1438 = vadd.f32 %v1238, %v1374
      %v1439 = vadd.f32 %v1239, %v1375
      %v1440 = vadd.f32 %v1240, %v1376
      %v1441 = vadd.f32 %v1241, %v1377
      %v1442 = vadd.f32 %v1242, %v1378
      %v1443 = vadd.f32 %v1243, %v1379
      %v1444 = vadd.f32 %v1244, %v1380
      %v1445 = vadd.f32 %v1245, %v1381
      %v1446 = vadd.f32 %v1246, %v1382
      %v1447 = vadd.f32 %v1247, %v1383
      %v1448 = vadd.f32 %v1248, %v1384
      %v1449 = vadd.f32 %v1249, %v1385
      %v1450 = vadd.f32 %v1250, %v1386
      %v1451 = vadd.f32 %v1251, %v1387
      %v1452 = vadd.f32 %v1252, %v1388
      %v1453 = vadd.f32 %v1253, %v1389
      %v1454 = vadd.f32 %v1254, %v1390
      %v1455 = vadd.f32 %v1255, %v1391
      %s1456 = sadd.s32 %s251, 2
      %s1457 = smul.u32 %s1456, 40
      %s1458 = scalar_lea.vmem %s238, %s1457
      %v1459 = vld [vmem:[%s1458] sm:$0xff]
      %v1460 = vld [vmem:[%s1458 + $0x8] sm:$0xff]
      %v1461 = vld [vmem:[%s1458 + $0x10] sm:$0xff]
      %v1462 = vld [vmem:[%s1458 + $0x18] sm:$0xff]
      %v1463 = vld [vmem:[%s1458 + $0x28] sm:$0xff]
      %v1464 = vld [vmem:[%s1458 + $0x30] sm:$0xff]
      %v1465 = vld [vmem:[%s1458 + $0x38] sm:$0xff]
      %v1466 = vld [vmem:[%s1458 + $0x40] sm:$0xff]
      %v1467 = vld [vmem:[%s1458 + $0x50] sm:$0xff]
      %v1468 = vld [vmem:[%s1458 + $0x58] sm:$0xff]
      %v1469 = vld [vmem:[%s1458 + $0x60] sm:$0xff]
      %v1470 = vld [vmem:[%s1458 + $0x68] sm:$0xff]
      %v1471 = vld [vmem:[%s1458 + $0x78] sm:$0xff]
      %v1472 = vld [vmem:[%s1458 + $0x80] sm:$0xff]
      %v1473 = vld [vmem:[%s1458 + $0x88] sm:$0xff]
      %v1474 = vld [vmem:[%s1458 + $0x90] sm:$0xff]
      %v1475 = vld [vmem:[%s1458 + $0xa0] sm:$0xff]
      %v1476 = vld [vmem:[%s1458 + $0xa8] sm:$0xff]
      %v1477 = vld [vmem:[%s1458 + $0xb0] sm:$0xff]
      %v1478 = vld [vmem:[%s1458 + $0xb8] sm:$0xff]
      %v1479 = vld [vmem:[%s1458 + $0xc8] sm:$0xff]
      %v1480 = vld [vmem:[%s1458 + $0xd0] sm:$0xff]
      %v1481 = vld [vmem:[%s1458 + $0xd8] sm:$0xff]
      %v1482 = vld [vmem:[%s1458 + $0xe0] sm:$0xff]
      %v1483 = vld [vmem:[%s1458 + $0xf0] sm:$0xff]
      %v1484 = vld [vmem:[%s1458 + $0xf8] sm:$0xff]
      %v1485 = vld [vmem:[%s1458 + $0x100] sm:$0xff]
      %v1486 = vld [vmem:[%s1458 + $0x108] sm:$0xff]
      %v1487 = vld [vmem:[%s1458 + $0x118] sm:$0xff]
      %v1488 = vld [vmem:[%s1458 + $0x120] sm:$0xff]
      %v1489 = vld [vmem:[%s1458 + $0x128] sm:$0xff]
      %v1490 = vld [vmem:[%s1458 + $0x130] sm:$0xff]
      %v1491 = vld [vmem:[%s1458 + $0x140] sm:$0xff]
      %v1492 = vld [vmem:[%s1458 + $0x148] sm:$0xff]
      %v1493 = vld [vmem:[%s1458 + $0x150] sm:$0xff]
      %v1494 = vld [vmem:[%s1458 + $0x158] sm:$0xff]
      %v1495 = vld [vmem:[%s1458 + $0x168] sm:$0xff]
      %v1496 = vld [vmem:[%s1458 + $0x170] sm:$0xff]
      %v1497 = vld [vmem:[%s1458 + $0x178] sm:$0xff]
      %v1498 = vld [vmem:[%s1458 + $0x180] sm:$0xff]
      %v1499 = vld [vmem:[%s1458 + $0x190] sm:$0xff]
      %v1500 = vld [vmem:[%s1458 + $0x198] sm:$0xff]
      %v1501 = vld [vmem:[%s1458 + $0x1a0] sm:$0xff]
      %v1502 = vld [vmem:[%s1458 + $0x1a8] sm:$0xff]
      %v1503 = vld [vmem:[%s1458 + $0x1b8] sm:$0xff]
      %v1504 = vld [vmem:[%s1458 + $0x1c0] sm:$0xff]
      %v1505 = vld [vmem:[%s1458 + $0x1c8] sm:$0xff]
      %v1506 = vld [vmem:[%s1458 + $0x1d0] sm:$0xff]
      %v1507 = vld [vmem:[%s1458 + $0x1e0] sm:$0xff]
      %v1508 = vld [vmem:[%s1458 + $0x1e8] sm:$0xff]
      %v1509 = vld [vmem:[%s1458 + $0x1f0] sm:$0xff]
      %v1510 = vld [vmem:[%s1458 + $0x1f8] sm:$0xff]
      %v1511 = vld [vmem:[%s1458 + $0x208] sm:$0xff]
      %v1512 = vld [vmem:[%s1458 + $0x210] sm:$0xff]
      %v1513 = vld [vmem:[%s1458 + $0x218] sm:$0xff]
      %v1514 = vld [vmem:[%s1458 + $0x220] sm:$0xff]
      %v1515 = vld [vmem:[%s1458 + $0x230] sm:$0xff]
      %v1516 = vld [vmem:[%s1458 + $0x238] sm:$0xff]
      %v1517 = vld [vmem:[%s1458 + $0x240] sm:$0xff]
      %v1518 = vld [vmem:[%s1458 + $0x248] sm:$0xff]
      %v1519 = vld [vmem:[%s1458 + $0x258] sm:$0xff]
      %v1520 = vld [vmem:[%s1458 + $0x260] sm:$0xff]
      %v1521 = vld [vmem:[%s1458 + $0x268] sm:$0xff]
      %v1522 = vld [vmem:[%s1458 + $0x270] sm:$0xff]
      %s1523 = scalar_lea.vmem %s1, 6
      %v1524 = vld [vmem:[%s1523] sm:$0x1]
      %v1526 = vlaneseq
      %v1527 = vshrl.u32 %v1526, 7
      %v1528 = vsub.s32 0, %v1527
      %v1529 = vrot.slane %v1524, %v1528
      %v1531 = vmul.f32 %v1459, %v1529
      %v1532 = vmul.f32 %v1460, %v1529
      %v1533 = vmul.f32 %v1461, %v1529
      %v1534 = vmul.f32 %v1462, %v1529
      %v1535 = vmul.f32 %v1463, %v1529
      %v1536 = vmul.f32 %v1464, %v1529
      %v1537 = vmul.f32 %v1465, %v1529
      %v1538 = vmul.f32 %v1466, %v1529
      %v1539 = vmul.f32 %v1467, %v1529
      %v1540 = vmul.f32 %v1468, %v1529
      %v1541 = vmul.f32 %v1469, %v1529
      %v1542 = vmul.f32 %v1470, %v1529
      %v1543 = vmul.f32 %v1471, %v1529
      %v1544 = vmul.f32 %v1472, %v1529
      %v1545 = vmul.f32 %v1473, %v1529
      %v1546 = vmul.f32 %v1474, %v1529
      %v1547 = vmul.f32 %v1475, %v1529
      %v1548 = vmul.f32 %v1476, %v1529
      %v1549 = vmul.f32 %v1477, %v1529
      %v1550 = vmul.f32 %v1478, %v1529
      %v1551 = vmul.f32 %v1479, %v1529
      %v1552 = vmul.f32 %v1480, %v1529
      %v1553 = vmul.f32 %v1481, %v1529
      %v1554 = vmul.f32 %v1482, %v1529
      %v1555 = vmul.f32 %v1483, %v1529
      %v1556 = vmul.f32 %v1484, %v1529
      %v1557 = vmul.f32 %v1485, %v1529
      %v1558 = vmul.f32 %v1486, %v1529
      %v1559 = vmul.f32 %v1487, %v1529
      %v1560 = vmul.f32 %v1488, %v1529
      %v1561 = vmul.f32 %v1489, %v1529
      %v1562 = vmul.f32 %v1490, %v1529
      %v1563 = vmul.f32 %v1491, %v1529
      %v1564 = vmul.f32 %v1492, %v1529
      %v1565 = vmul.f32 %v1493, %v1529
      %v1566 = vmul.f32 %v1494, %v1529
      %v1567 = vmul.f32 %v1495, %v1529
      %v1568 = vmul.f32 %v1496, %v1529
      %v1569 = vmul.f32 %v1497, %v1529
      %v1570 = vmul.f32 %v1498, %v1529
      %v1571 = vmul.f32 %v1499, %v1529
      %v1572 = vmul.f32 %v1500, %v1529
      %v1573 = vmul.f32 %v1501, %v1529
      %v1574 = vmul.f32 %v1502, %v1529
      %v1575 = vmul.f32 %v1503, %v1529
      %v1576 = vmul.f32 %v1504, %v1529
      %v1577 = vmul.f32 %v1505, %v1529
      %v1578 = vmul.f32 %v1506, %v1529
      %v1579 = vmul.f32 %v1507, %v1529
      %v1580 = vmul.f32 %v1508, %v1529
      %v1581 = vmul.f32 %v1509, %v1529
      %v1582 = vmul.f32 %v1510, %v1529
      %v1583 = vmul.f32 %v1511, %v1529
      %v1584 = vmul.f32 %v1512, %v1529
      %v1585 = vmul.f32 %v1513, %v1529
      %v1586 = vmul.f32 %v1514, %v1529
      %v1587 = vmul.f32 %v1515, %v1529
      %v1588 = vmul.f32 %v1516, %v1529
      %v1589 = vmul.f32 %v1517, %v1529
      %v1590 = vmul.f32 %v1518, %v1529
      %v1591 = vmul.f32 %v1519, %v1529
      %v1592 = vmul.f32 %v1520, %v1529
      %v1593 = vmul.f32 %v1521, %v1529
      %v1594 = vmul.f32 %v1522, %v1529
      %v1595 = vadd.f32 %v1392, %v1531
      %v1596 = vadd.f32 %v1393, %v1532
      %v1597 = vadd.f32 %v1394, %v1533
      %v1598 = vadd.f32 %v1395, %v1534
      %v1599 = vadd.f32 %v1396, %v1535
      %v1600 = vadd.f32 %v1397, %v1536
      %v1601 = vadd.f32 %v1398, %v1537
      %v1602 = vadd.f32 %v1399, %v1538
      %v1603 = vadd.f32 %v1400, %v1539
      %v1604 = vadd.f32 %v1401, %v1540
      %v1605 = vadd.f32 %v1402, %v1541
      %v1606 = vadd.f32 %v1403, %v1542
      %v1607 = vadd.f32 %v1404, %v1543
      %v1608 = vadd.f32 %v1405, %v1544
      %v1609 = vadd.f32 %v1406, %v1545
      %v1610 = vadd.f32 %v1407, %v1546
      %v1611 = vadd.f32 %v1408, %v1547
      %v1612 = vadd.f32 %v1409, %v1548
      %v1613 = vadd.f32 %v1410, %v1549
      %v1614 = vadd.f32 %v1411, %v1550
      %v1615 = vadd.f32 %v1412, %v1551
      %v1616 = vadd.f32 %v1413, %v1552
      %v1617 = vadd.f32 %v1414, %v1553
      %v1618 = vadd.f32 %v1415, %v1554
      %v1619 = vadd.f32 %v1416, %v1555
      %v1620 = vadd.f32 %v1417, %v1556
      %v1621 = vadd.f32 %v1418, %v1557
      %v1622 = vadd.f32 %v1419, %v1558
      %v1623 = vadd.f32 %v1420, %v1559
      %v1624 = vadd.f32 %v1421, %v1560
      %v1625 = vadd.f32 %v1422, %v1561
      %v1626 = vadd.f32 %v1423, %v1562
      %v1627 = vadd.f32 %v1424, %v1563
      %v1628 = vadd.f32 %v1425, %v1564
      %v1629 = vadd.f32 %v1426, %v1565
      %v1630 = vadd.f32 %v1427, %v1566
      %v1631 = vadd.f32 %v1428, %v1567
      %v1632 = vadd.f32 %v1429, %v1568
      %v1633 = vadd.f32 %v1430, %v1569
      %v1634 = vadd.f32 %v1431, %v1570
      %v1635 = vadd.f32 %v1432, %v1571
      %v1636 = vadd.f32 %v1433, %v1572
      %v1637 = vadd.f32 %v1434, %v1573
      %v1638 = vadd.f32 %v1435, %v1574
      %v1639 = vadd.f32 %v1436, %v1575
      %v1640 = vadd.f32 %v1437, %v1576
      %v1641 = vadd.f32 %v1438, %v1577
      %v1642 = vadd.f32 %v1439, %v1578
      %v1643 = vadd.f32 %v1440, %v1579
      %v1644 = vadd.f32 %v1441, %v1580
      %v1645 = vadd.f32 %v1442, %v1581
      %v1646 = vadd.f32 %v1443, %v1582
      %v1647 = vadd.f32 %v1444, %v1583
      %v1648 = vadd.f32 %v1445, %v1584
      %v1649 = vadd.f32 %v1446, %v1585
      %v1650 = vadd.f32 %v1447, %v1586
      %v1651 = vadd.f32 %v1448, %v1587
      %v1652 = vadd.f32 %v1449, %v1588
      %v1653 = vadd.f32 %v1450, %v1589
      %v1654 = vadd.f32 %v1451, %v1590
      %v1655 = vadd.f32 %v1452, %v1591
      %v1656 = vadd.f32 %v1453, %v1592
      %v1657 = vadd.f32 %v1454, %v1593
      %v1658 = vadd.f32 %v1455, %v1594
      %v1659 = vld [vmem:[%s1458 + $0x1] sm:$0xff]
      %v1660 = vld [vmem:[%s1458 + $0x9] sm:$0xff]
      %v1661 = vld [vmem:[%s1458 + $0x11] sm:$0xff]
      %v1662 = vld [vmem:[%s1458 + $0x19] sm:$0xff]
      %v1663 = vld [vmem:[%s1458 + $0x29] sm:$0xff]
      %v1664 = vld [vmem:[%s1458 + $0x31] sm:$0xff]
      %v1665 = vld [vmem:[%s1458 + $0x39] sm:$0xff]
      %v1666 = vld [vmem:[%s1458 + $0x41] sm:$0xff]
      %v1667 = vld [vmem:[%s1458 + $0x51] sm:$0xff]
      %v1668 = vld [vmem:[%s1458 + $0x59] sm:$0xff]
      %v1669 = vld [vmem:[%s1458 + $0x61] sm:$0xff]
      %v1670 = vld [vmem:[%s1458 + $0x69] sm:$0xff]
      %v1671 = vld [vmem:[%s1458 + $0x79] sm:$0xff]
      %v1672 = vld [vmem:[%s1458 + $0x81] sm:$0xff]
      %v1673 = vld [vmem:[%s1458 + $0x89] sm:$0xff]
      %v1674 = vld [vmem:[%s1458 + $0x91] sm:$0xff]
      %v1675 = vld [vmem:[%s1458 + $0xa1] sm:$0xff]
      %v1676 = vld [vmem:[%s1458 + $0xa9] sm:$0xff]
      %v1677 = vld [vmem:[%s1458 + $0xb1] sm:$0xff]
      %v1678 = vld [vmem:[%s1458 + $0xb9] sm:$0xff]
      %v1679 = vld [vmem:[%s1458 + $0xc9] sm:$0xff]
      %v1680 = vld [vmem:[%s1458 + $0xd1] sm:$0xff]
      %v1681 = vld [vmem:[%s1458 + $0xd9] sm:$0xff]
      %v1682 = vld [vmem:[%s1458 + $0xe1] sm:$0xff]
      %v1683 = vld [vmem:[%s1458 + $0xf1] sm:$0xff]
      %v1684 = vld [vmem:[%s1458 + $0xf9] sm:$0xff]
      %v1685 = vld [vmem:[%s1458 + $0x101] sm:$0xff]
      %v1686 = vld [vmem:[%s1458 + $0x109] sm:$0xff]
      %v1687 = vld [vmem:[%s1458 + $0x119] sm:$0xff]
      %v1688 = vld [vmem:[%s1458 + $0x121] sm:$0xff]
      %v1689 = vld [vmem:[%s1458 + $0x129] sm:$0xff]
      %v1690 = vld [vmem:[%s1458 + $0x131] sm:$0xff]
      %v1691 = vld [vmem:[%s1458 + $0x141] sm:$0xff]
      %v1692 = vld [vmem:[%s1458 + $0x149] sm:$0xff]
      %v1693 = vld [vmem:[%s1458 + $0x151] sm:$0xff]
      %v1694 = vld [vmem:[%s1458 + $0x159] sm:$0xff]
      %v1695 = vld [vmem:[%s1458 + $0x169] sm:$0xff]
      %v1696 = vld [vmem:[%s1458 + $0x171] sm:$0xff]
      %v1697 = vld [vmem:[%s1458 + $0x179] sm:$0xff]
      %v1698 = vld [vmem:[%s1458 + $0x181] sm:$0xff]
      %v1699 = vld [vmem:[%s1458 + $0x191] sm:$0xff]
      %v1700 = vld [vmem:[%s1458 + $0x199] sm:$0xff]
      %v1701 = vld [vmem:[%s1458 + $0x1a1] sm:$0xff]
      %v1702 = vld [vmem:[%s1458 + $0x1a9] sm:$0xff]
      %v1703 = vld [vmem:[%s1458 + $0x1b9] sm:$0xff]
      %v1704 = vld [vmem:[%s1458 + $0x1c1] sm:$0xff]
      %v1705 = vld [vmem:[%s1458 + $0x1c9] sm:$0xff]
      %v1706 = vld [vmem:[%s1458 + $0x1d1] sm:$0xff]
      %v1707 = vld [vmem:[%s1458 + $0x1e1] sm:$0xff]
      %v1708 = vld [vmem:[%s1458 + $0x1e9] sm:$0xff]
      %v1709 = vld [vmem:[%s1458 + $0x1f1] sm:$0xff]
      %v1710 = vld [vmem:[%s1458 + $0x1f9] sm:$0xff]
      %v1711 = vld [vmem:[%s1458 + $0x209] sm:$0xff]
      %v1712 = vld [vmem:[%s1458 + $0x211] sm:$0xff]
      %v1713 = vld [vmem:[%s1458 + $0x219] sm:$0xff]
      %v1714 = vld [vmem:[%s1458 + $0x221] sm:$0xff]
      %v1715 = vld [vmem:[%s1458 + $0x231] sm:$0xff]
      %v1716 = vld [vmem:[%s1458 + $0x239] sm:$0xff]
      %v1717 = vld [vmem:[%s1458 + $0x241] sm:$0xff]
      %v1718 = vld [vmem:[%s1458 + $0x249] sm:$0xff]
      %v1719 = vld [vmem:[%s1458 + $0x259] sm:$0xff]
      %v1720 = vld [vmem:[%s1458 + $0x261] sm:$0xff]
      %v1721 = vld [vmem:[%s1458 + $0x269] sm:$0xff]
      %v1722 = vld [vmem:[%s1458 + $0x271] sm:$0xff]
      %s1723 = scalar_lea.vmem %s1, 7
      %v1724 = vld [vmem:[%s1723] sm:$0x1]
      %v1726 = vlaneseq
      %v1727 = vshrl.u32 %v1726, 7
      %v1728 = vsub.s32 0, %v1727
      %v1729 = vrot.slane %v1724, %v1728
      %v1731 = vmul.f32 %v1659, %v1729
      %v1732 = vmul.f32 %v1660, %v1729
      %v1733 = vmul.f32 %v1661, %v1729
      %v1734 = vmul.f32 %v1662, %v1729
      %v1735 = vmul.f32 %v1663, %v1729
      %v1736 = vmul.f32 %v1664, %v1729
      %v1737 = vmul.f32 %v1665, %v1729
      %v1738 = vmul.f32 %v1666, %v1729
      %v1739 = vmul.f32 %v1667, %v1729
      %v1740 = vmul.f32 %v1668, %v1729
      %v1741 = vmul.f32 %v1669, %v1729
      %v1742 = vmul.f32 %v1670, %v1729
      %v1743 = vmul.f32 %v1671, %v1729
      %v1744 = vmul.f32 %v1672, %v1729
      %v1745 = vmul.f32 %v1673, %v1729
      %v1746 = vmul.f32 %v1674, %v1729
      %v1747 = vmul.f32 %v1675, %v1729
      %v1748 = vmul.f32 %v1676, %v1729
      %v1749 = vmul.f32 %v1677, %v1729
      %v1750 = vmul.f32 %v1678, %v1729
      %v1751 = vmul.f32 %v1679, %v1729
      %v1752 = vmul.f32 %v1680, %v1729
      %v1753 = vmul.f32 %v1681, %v1729
      %v1754 = vmul.f32 %v1682, %v1729
      %v1755 = vmul.f32 %v1683, %v1729
      %v1756 = vmul.f32 %v1684, %v1729
      %v1757 = vmul.f32 %v1685, %v1729
      %v1758 = vmul.f32 %v1686, %v1729
      %v1759 = vmul.f32 %v1687, %v1729
      %v1760 = vmul.f32 %v1688, %v1729
      %v1761 = vmul.f32 %v1689, %v1729
      %v1762 = vmul.f32 %v1690, %v1729
      %v1763 = vmul.f32 %v1691, %v1729
      %v1764 = vmul.f32 %v1692, %v1729
      %v1765 = vmul.f32 %v1693, %v1729
      %v1766 = vmul.f32 %v1694, %v1729
      %v1767 = vmul.f32 %v1695, %v1729
      %v1768 = vmul.f32 %v1696, %v1729
      %v1769 = vmul.f32 %v1697, %v1729
      %v1770 = vmul.f32 %v1698, %v1729
      %v1771 = vmul.f32 %v1699, %v1729
      %v1772 = vmul.f32 %v1700, %v1729
      %v1773 = vmul.f32 %v1701, %v1729
      %v1774 = vmul.f32 %v1702, %v1729
      %v1775 = vmul.f32 %v1703, %v1729
      %v1776 = vmul.f32 %v1704, %v1729
      %v1777 = vmul.f32 %v1705, %v1729
      %v1778 = vmul.f32 %v1706, %v1729
      %v1779 = vmul.f32 %v1707, %v1729
      %v1780 = vmul.f32 %v1708, %v1729
      %v1781 = vmul.f32 %v1709, %v1729
      %v1782 = vmul.f32 %v1710, %v1729
      %v1783 = vmul.f32 %v1711, %v1729
      %v1784 = vmul.f32 %v1712, %v1729
      %v1785 = vmul.f32 %v1713, %v1729
      %v1786 = vmul.f32 %v1714, %v1729
      %v1787 = vmul.f32 %v1715, %v1729
      %v1788 = vmul.f32 %v1716, %v1729
      %v1789 = vmul.f32 %v1717, %v1729
      %v1790 = vmul.f32 %v1718, %v1729
      %v1791 = vmul.f32 %v1719, %v1729
      %v1792 = vmul.f32 %v1720, %v1729
      %v1793 = vmul.f32 %v1721, %v1729
      %v1794 = vmul.f32 %v1722, %v1729
      %v1795 = vadd.f32 %v1595, %v1731
      %v1796 = vadd.f32 %v1596, %v1732
      %v1797 = vadd.f32 %v1597, %v1733
      %v1798 = vadd.f32 %v1598, %v1734
      %v1799 = vadd.f32 %v1599, %v1735
      %v1800 = vadd.f32 %v1600, %v1736
      %v1801 = vadd.f32 %v1601, %v1737
      %v1802 = vadd.f32 %v1602, %v1738
      %v1803 = vadd.f32 %v1603, %v1739
      %v1804 = vadd.f32 %v1604, %v1740
      %v1805 = vadd.f32 %v1605, %v1741
      %v1806 = vadd.f32 %v1606, %v1742
      %v1807 = vadd.f32 %v1607, %v1743
      %v1808 = vadd.f32 %v1608, %v1744
      %v1809 = vadd.f32 %v1609, %v1745
      %v1810 = vadd.f32 %v1610, %v1746
      %v1811 = vadd.f32 %v1611, %v1747
      %v1812 = vadd.f32 %v1612, %v1748
      %v1813 = vadd.f32 %v1613, %v1749
      %v1814 = vadd.f32 %v1614, %v1750
      %v1815 = vadd.f32 %v1615, %v1751
      %v1816 = vadd.f32 %v1616, %v1752
      %v1817 = vadd.f32 %v1617, %v1753
      %v1818 = vadd.f32 %v1618, %v1754
      %v1819 = vadd.f32 %v1619, %v1755
      %v1820 = vadd.f32 %v1620, %v1756
      %v1821 = vadd.f32 %v1621, %v1757
      %v1822 = vadd.f32 %v1622, %v1758
      %v1823 = vadd.f32 %v1623, %v1759
      %v1824 = vadd.f32 %v1624, %v1760
      %v1825 = vadd.f32 %v1625, %v1761
      %v1826 = vadd.f32 %v1626, %v1762
      %v1827 = vadd.f32 %v1627, %v1763
      %v1828 = vadd.f32 %v1628, %v1764
      %v1829 = vadd.f32 %v1629, %v1765
      %v1830 = vadd.f32 %v1630, %v1766
      %v1831 = vadd.f32 %v1631, %v1767
      %v1832 = vadd.f32 %v1632, %v1768
      %v1833 = vadd.f32 %v1633, %v1769
      %v1834 = vadd.f32 %v1634, %v1770
      %v1835 = vadd.f32 %v1635, %v1771
      %v1836 = vadd.f32 %v1636, %v1772
      %v1837 = vadd.f32 %v1637, %v1773
      %v1838 = vadd.f32 %v1638, %v1774
      %v1839 = vadd.f32 %v1639, %v1775
      %v1840 = vadd.f32 %v1640, %v1776
      %v1841 = vadd.f32 %v1641, %v1777
      %v1842 = vadd.f32 %v1642, %v1778
      %v1843 = vadd.f32 %v1643, %v1779
      %v1844 = vadd.f32 %v1644, %v1780
      %v1845 = vadd.f32 %v1645, %v1781
      %v1846 = vadd.f32 %v1646, %v1782
      %v1847 = vadd.f32 %v1647, %v1783
      %v1848 = vadd.f32 %v1648, %v1784
      %v1849 = vadd.f32 %v1649, %v1785
      %v1850 = vadd.f32 %v1650, %v1786
      %v1851 = vadd.f32 %v1651, %v1787
      %v1852 = vadd.f32 %v1652, %v1788
      %v1853 = vadd.f32 %v1653, %v1789
      %v1854 = vadd.f32 %v1654, %v1790
      %v1855 = vadd.f32 %v1655, %v1791
      %v1856 = vadd.f32 %v1656, %v1792
      %v1857 = vadd.f32 %v1657, %v1793
      %v1858 = vadd.f32 %v1658, %v1794
      %v1859 = vld [vmem:[%s1458 + $0x2] sm:$0xff]
      %v1860 = vld [vmem:[%s1458 + $0xa] sm:$0xff]
      %v1861 = vld [vmem:[%s1458 + $0x12] sm:$0xff]
      %v1862 = vld [vmem:[%s1458 + $0x1a] sm:$0xff]
      %v1863 = vld [vmem:[%s1458 + $0x2a] sm:$0xff]
      %v1864 = vld [vmem:[%s1458 + $0x32] sm:$0xff]
      %v1865 = vld [vmem:[%s1458 + $0x3a] sm:$0xff]
      %v1866 = vld [vmem:[%s1458 + $0x42] sm:$0xff]
      %v1867 = vld [vmem:[%s1458 + $0x52] sm:$0xff]
      %v1868 = vld [vmem:[%s1458 + $0x5a] sm:$0xff]
      %v1869 = vld [vmem:[%s1458 + $0x62] sm:$0xff]
      %v1870 = vld [vmem:[%s1458 + $0x6a] sm:$0xff]
      %v1871 = vld [vmem:[%s1458 + $0x7a] sm:$0xff]
      %v1872 = vld [vmem:[%s1458 + $0x82] sm:$0xff]
      %v1873 = vld [vmem:[%s1458 + $0x8a] sm:$0xff]
      %v1874 = vld [vmem:[%s1458 + $0x92] sm:$0xff]
      %v1875 = vld [vmem:[%s1458 + $0xa2] sm:$0xff]
      %v1876 = vld [vmem:[%s1458 + $0xaa] sm:$0xff]
      %v1877 = vld [vmem:[%s1458 + $0xb2] sm:$0xff]
      %v1878 = vld [vmem:[%s1458 + $0xba] sm:$0xff]
      %v1879 = vld [vmem:[%s1458 + $0xca] sm:$0xff]
      %v1880 = vld [vmem:[%s1458 + $0xd2] sm:$0xff]
      %v1881 = vld [vmem:[%s1458 + $0xda] sm:$0xff]
      %v1882 = vld [vmem:[%s1458 + $0xe2] sm:$0xff]
      %v1883 = vld [vmem:[%s1458 + $0xf2] sm:$0xff]
      %v1884 = vld [vmem:[%s1458 + $0xfa] sm:$0xff]
      %v1885 = vld [vmem:[%s1458 + $0x102] sm:$0xff]
      %v1886 = vld [vmem:[%s1458 + $0x10a] sm:$0xff]
      %v1887 = vld [vmem:[%s1458 + $0x11a] sm:$0xff]
      %v1888 = vld [vmem:[%s1458 + $0x122] sm:$0xff]
      %v1889 = vld [vmem:[%s1458 + $0x12a] sm:$0xff]
      %v1890 = vld [vmem:[%s1458 + $0x132] sm:$0xff]
      %v1891 = vld [vmem:[%s1458 + $0x142] sm:$0xff]
      %v1892 = vld [vmem:[%s1458 + $0x14a] sm:$0xff]
      %v1893 = vld [vmem:[%s1458 + $0x152] sm:$0xff]
      %v1894 = vld [vmem:[%s1458 + $0x15a] sm:$0xff]
      %v1895 = vld [vmem:[%s1458 + $0x16a] sm:$0xff]
      %v1896 = vld [vmem:[%s1458 + $0x172] sm:$0xff]
      %v1897 = vld [vmem:[%s1458 + $0x17a] sm:$0xff]
      %v1898 = vld [vmem:[%s1458 + $0x182] sm:$0xff]
      %v1899 = vld [vmem:[%s1458 + $0x192] sm:$0xff]
      %v1900 = vld [vmem:[%s1458 + $0x19a] sm:$0xff]
      %v1901 = vld [vmem:[%s1458 + $0x1a2] sm:$0xff]
      %v1902 = vld [vmem:[%s1458 + $0x1aa] sm:$0xff]
      %v1903 = vld [vmem:[%s1458 + $0x1ba] sm:$0xff]
      %v1904 = vld [vmem:[%s1458 + $0x1c2] sm:$0xff]
      %v1905 = vld [vmem:[%s1458 + $0x1ca] sm:$0xff]
      %v1906 = vld [vmem:[%s1458 + $0x1d2] sm:$0xff]
      %v1907 = vld [vmem:[%s1458 + $0x1e2] sm:$0xff]
      %v1908 = vld [vmem:[%s1458 + $0x1ea] sm:$0xff]
      %v1909 = vld [vmem:[%s1458 + $0x1f2] sm:$0xff]
      %v1910 = vld [vmem:[%s1458 + $0x1fa] sm:$0xff]
      %v1911 = vld [vmem:[%s1458 + $0x20a] sm:$0xff]
      %v1912 = vld [vmem:[%s1458 + $0x212] sm:$0xff]
      %v1913 = vld [vmem:[%s1458 + $0x21a] sm:$0xff]
      %v1914 = vld [vmem:[%s1458 + $0x222] sm:$0xff]
      %v1915 = vld [vmem:[%s1458 + $0x232] sm:$0xff]
      %v1916 = vld [vmem:[%s1458 + $0x23a] sm:$0xff]
      %v1917 = vld [vmem:[%s1458 + $0x242] sm:$0xff]
      %v1918 = vld [vmem:[%s1458 + $0x24a] sm:$0xff]
      %v1919 = vld [vmem:[%s1458 + $0x25a] sm:$0xff]
      %v1920 = vld [vmem:[%s1458 + $0x262] sm:$0xff]
      %v1921 = vld [vmem:[%s1458 + $0x26a] sm:$0xff]
      %v1922 = vld [vmem:[%s1458 + $0x272] sm:$0xff]
      %s1923 = scalar_lea.vmem %s1, 8
      %v1924 = vld [vmem:[%s1923] sm:$0x1]
      %v1926 = vlaneseq
      %v1927 = vshrl.u32 %v1926, 7
      %v1928 = vsub.s32 0, %v1927
      %v1929 = vrot.slane %v1924, %v1928
      %v1931 = vmul.f32 %v1859, %v1929
      %v1932 = vmul.f32 %v1860, %v1929
      %v1933 = vmul.f32 %v1861, %v1929
      %v1934 = vmul.f32 %v1862, %v1929
      %v1935 = vmul.f32 %v1863, %v1929
      %v1936 = vmul.f32 %v1864, %v1929
      %v1937 = vmul.f32 %v1865, %v1929
      %v1938 = vmul.f32 %v1866, %v1929
      %v1939 = vmul.f32 %v1867, %v1929
      %v1940 = vmul.f32 %v1868, %v1929
      %v1941 = vmul.f32 %v1869, %v1929
      %v1942 = vmul.f32 %v1870, %v1929
      %v1943 = vmul.f32 %v1871, %v1929
      %v1944 = vmul.f32 %v1872, %v1929
      %v1945 = vmul.f32 %v1873, %v1929
      %v1946 = vmul.f32 %v1874, %v1929
      %v1947 = vmul.f32 %v1875, %v1929
      %v1948 = vmul.f32 %v1876, %v1929
      %v1949 = vmul.f32 %v1877, %v1929
      %v1950 = vmul.f32 %v1878, %v1929
      %v1951 = vmul.f32 %v1879, %v1929
      %v1952 = vmul.f32 %v1880, %v1929
      %v1953 = vmul.f32 %v1881, %v1929
      %v1954 = vmul.f32 %v1882, %v1929
      %v1955 = vmul.f32 %v1883, %v1929
      %v1956 = vmul.f32 %v1884, %v1929
      %v1957 = vmul.f32 %v1885, %v1929
      %v1958 = vmul.f32 %v1886, %v1929
      %v1959 = vmul.f32 %v1887, %v1929
      %v1960 = vmul.f32 %v1888, %v1929
      %v1961 = vmul.f32 %v1889, %v1929
      %v1962 = vmul.f32 %v1890, %v1929
      %v1963 = vmul.f32 %v1891, %v1929
      %v1964 = vmul.f32 %v1892, %v1929
      %v1965 = vmul.f32 %v1893, %v1929
      %v1966 = vmul.f32 %v1894, %v1929
      %v1967 = vmul.f32 %v1895, %v1929
      %v1968 = vmul.f32 %v1896, %v1929
      %v1969 = vmul.f32 %v1897, %v1929
      %v1970 = vmul.f32 %v1898, %v1929
      %v1971 = vmul.f32 %v1899, %v1929
      %v1972 = vmul.f32 %v1900, %v1929
      %v1973 = vmul.f32 %v1901, %v1929
      %v1974 = vmul.f32 %v1902, %v1929
      %v1975 = vmul.f32 %v1903, %v1929
      %v1976 = vmul.f32 %v1904, %v1929
      %v1977 = vmul.f32 %v1905, %v1929
      %v1978 = vmul.f32 %v1906, %v1929
      %v1979 = vmul.f32 %v1907, %v1929
      %v1980 = vmul.f32 %v1908, %v1929
      %v1981 = vmul.f32 %v1909, %v1929
      %v1982 = vmul.f32 %v1910, %v1929
      %v1983 = vmul.f32 %v1911, %v1929
      %v1984 = vmul.f32 %v1912, %v1929
      %v1985 = vmul.f32 %v1913, %v1929
      %v1986 = vmul.f32 %v1914, %v1929
      %v1987 = vmul.f32 %v1915, %v1929
      %v1988 = vmul.f32 %v1916, %v1929
      %v1989 = vmul.f32 %v1917, %v1929
      %v1990 = vmul.f32 %v1918, %v1929
      %v1991 = vmul.f32 %v1919, %v1929
      %v1992 = vmul.f32 %v1920, %v1929
      %v1993 = vmul.f32 %v1921, %v1929
      %v1994 = vmul.f32 %v1922, %v1929
      %v1995 = vadd.f32 %v1795, %v1931
      %v1996 = vadd.f32 %v1796, %v1932
      %v1997 = vadd.f32 %v1797, %v1933
      %v1998 = vadd.f32 %v1798, %v1934
      %v1999 = vadd.f32 %v1799, %v1935
      %v2000 = vadd.f32 %v1800, %v1936
      %v2001 = vadd.f32 %v1801, %v1937
      %v2002 = vadd.f32 %v1802, %v1938
      %v2003 = vadd.f32 %v1803, %v1939
      %v2004 = vadd.f32 %v1804, %v1940
      %v2005 = vadd.f32 %v1805, %v1941
      %v2006 = vadd.f32 %v1806, %v1942
      %v2007 = vadd.f32 %v1807, %v1943
      %v2008 = vadd.f32 %v1808, %v1944
      %v2009 = vadd.f32 %v1809, %v1945
      %v2010 = vadd.f32 %v1810, %v1946
      %v2011 = vadd.f32 %v1811, %v1947
      %v2012 = vadd.f32 %v1812, %v1948
      %v2013 = vadd.f32 %v1813, %v1949
      %v2014 = vadd.f32 %v1814, %v1950
      %v2015 = vadd.f32 %v1815, %v1951
      %v2016 = vadd.f32 %v1816, %v1952
      %v2017 = vadd.f32 %v1817, %v1953
      %v2018 = vadd.f32 %v1818, %v1954
      %v2019 = vadd.f32 %v1819, %v1955
      %v2020 = vadd.f32 %v1820, %v1956
      %v2021 = vadd.f32 %v1821, %v1957
      %v2022 = vadd.f32 %v1822, %v1958
      %v2023 = vadd.f32 %v1823, %v1959
      %v2024 = vadd.f32 %v1824, %v1960
      %v2025 = vadd.f32 %v1825, %v1961
      %v2026 = vadd.f32 %v1826, %v1962
      %v2027 = vadd.f32 %v1827, %v1963
      %v2028 = vadd.f32 %v1828, %v1964
      %v2029 = vadd.f32 %v1829, %v1965
      %v2030 = vadd.f32 %v1830, %v1966
      %v2031 = vadd.f32 %v1831, %v1967
      %v2032 = vadd.f32 %v1832, %v1968
      %v2033 = vadd.f32 %v1833, %v1969
      %v2034 = vadd.f32 %v1834, %v1970
      %v2035 = vadd.f32 %v1835, %v1971
      %v2036 = vadd.f32 %v1836, %v1972
      %v2037 = vadd.f32 %v1837, %v1973
      %v2038 = vadd.f32 %v1838, %v1974
      %v2039 = vadd.f32 %v1839, %v1975
      %v2040 = vadd.f32 %v1840, %v1976
      %v2041 = vadd.f32 %v1841, %v1977
      %v2042 = vadd.f32 %v1842, %v1978
      %v2043 = vadd.f32 %v1843, %v1979
      %v2044 = vadd.f32 %v1844, %v1980
      %v2045 = vadd.f32 %v1845, %v1981
      %v2046 = vadd.f32 %v1846, %v1982
      %v2047 = vadd.f32 %v1847, %v1983
      %v2048 = vadd.f32 %v1848, %v1984
      %v2049 = vadd.f32 %v1849, %v1985
      %v2050 = vadd.f32 %v1850, %v1986
      %v2051 = vadd.f32 %v1851, %v1987
      %v2052 = vadd.f32 %v1852, %v1988
      %v2053 = vadd.f32 %v1853, %v1989
      %v2054 = vadd.f32 %v1854, %v1990
      %v2055 = vadd.f32 %v1855, %v1991
      %v2056 = vadd.f32 %v1856, %v1992
      %v2057 = vadd.f32 %v1857, %v1993
      %v2058 = vadd.f32 %v1858, %v1994
      %v2059 = vld [vmem:[%s2] sm:$0x1]
      %v2061 = vlaneseq
      %v2062 = vshrl.u32 %v2061, 7
      %v2063 = vsub.s32 0, %v2062
      %v2064 = vrot.slane %v2059, %v2063
      %v2066 = vadd.f32 %v1995, %v2064
      %v2067 = vadd.f32 %v1996, %v2064
      %v2068 = vadd.f32 %v1997, %v2064
      %v2069 = vadd.f32 %v1998, %v2064
      %v2070 = vadd.f32 %v1999, %v2064
      %v2071 = vadd.f32 %v2000, %v2064
      %v2072 = vadd.f32 %v2001, %v2064
      %v2073 = vadd.f32 %v2002, %v2064
      %v2074 = vadd.f32 %v2003, %v2064
      %v2075 = vadd.f32 %v2004, %v2064
      %v2076 = vadd.f32 %v2005, %v2064
      %v2077 = vadd.f32 %v2006, %v2064
      %v2078 = vadd.f32 %v2007, %v2064
      %v2079 = vadd.f32 %v2008, %v2064
      %v2080 = vadd.f32 %v2009, %v2064
      %v2081 = vadd.f32 %v2010, %v2064
      %v2082 = vadd.f32 %v2011, %v2064
      %v2083 = vadd.f32 %v2012, %v2064
      %v2084 = vadd.f32 %v2013, %v2064
      %v2085 = vadd.f32 %v2014, %v2064
      %v2086 = vadd.f32 %v2015, %v2064
      %v2087 = vadd.f32 %v2016, %v2064
      %v2088 = vadd.f32 %v2017, %v2064
      %v2089 = vadd.f32 %v2018, %v2064
      %v2090 = vadd.f32 %v2019, %v2064
      %v2091 = vadd.f32 %v2020, %v2064
      %v2092 = vadd.f32 %v2021, %v2064
      %v2093 = vadd.f32 %v2022, %v2064
      %v2094 = vadd.f32 %v2023, %v2064
      %v2095 = vadd.f32 %v2024, %v2064
      %v2096 = vadd.f32 %v2025, %v2064
      %v2097 = vadd.f32 %v2026, %v2064
      %v2098 = vadd.f32 %v2027, %v2064
      %v2099 = vadd.f32 %v2028, %v2064
      %v2100 = vadd.f32 %v2029, %v2064
      %v2101 = vadd.f32 %v2030, %v2064
      %v2102 = vadd.f32 %v2031, %v2064
      %v2103 = vadd.f32 %v2032, %v2064
      %v2104 = vadd.f32 %v2033, %v2064
      %v2105 = vadd.f32 %v2034, %v2064
      %v2106 = vadd.f32 %v2035, %v2064
      %v2107 = vadd.f32 %v2036, %v2064
      %v2108 = vadd.f32 %v2037, %v2064
      %v2109 = vadd.f32 %v2038, %v2064
      %v2110 = vadd.f32 %v2039, %v2064
      %v2111 = vadd.f32 %v2040, %v2064
      %v2112 = vadd.f32 %v2041, %v2064
      %v2113 = vadd.f32 %v2042, %v2064
      %v2114 = vadd.f32 %v2043, %v2064
      %v2115 = vadd.f32 %v2044, %v2064
      %v2116 = vadd.f32 %v2045, %v2064
      %v2117 = vadd.f32 %v2046, %v2064
      %v2118 = vadd.f32 %v2047, %v2064
      %v2119 = vadd.f32 %v2048, %v2064
      %v2120 = vadd.f32 %v2049, %v2064
      %v2121 = vadd.f32 %v2050, %v2064
      %v2122 = vadd.f32 %v2051, %v2064
      %v2123 = vadd.f32 %v2052, %v2064
      %v2124 = vadd.f32 %v2053, %v2064
      %v2125 = vadd.f32 %v2054, %v2064
      %v2126 = vadd.f32 %v2055, %v2064
      %v2127 = vadd.f32 %v2056, %v2064
      %v2128 = vadd.f32 %v2057, %v2064
      %v2129 = vadd.f32 %v2058, %v2064
      %v2130 = vpack.c.bf16 %v2067, %v2066
      %v2131 = vpack.c.bf16 %v2069, %v2068
      %v2132 = vpack.c.bf16 %v2071, %v2070
      %v2133 = vpack.c.bf16 %v2073, %v2072
      %v2134 = vpack.c.bf16 %v2075, %v2074
      %v2135 = vpack.c.bf16 %v2077, %v2076
      %v2136 = vpack.c.bf16 %v2079, %v2078
      %v2137 = vpack.c.bf16 %v2081, %v2080
      %v2138 = vpack.c.bf16 %v2083, %v2082
      %v2139 = vpack.c.bf16 %v2085, %v2084
      %v2140 = vpack.c.bf16 %v2087, %v2086
      %v2141 = vpack.c.bf16 %v2089, %v2088
      %v2142 = vpack.c.bf16 %v2091, %v2090
      %v2143 = vpack.c.bf16 %v2093, %v2092
      %v2144 = vpack.c.bf16 %v2095, %v2094
      %v2145 = vpack.c.bf16 %v2097, %v2096
      %v2146 = vpack.c.bf16 %v2099, %v2098
      %v2147 = vpack.c.bf16 %v2101, %v2100
      %v2148 = vpack.c.bf16 %v2103, %v2102
      %v2149 = vpack.c.bf16 %v2105, %v2104
      %v2150 = vpack.c.bf16 %v2107, %v2106
      %v2151 = vpack.c.bf16 %v2109, %v2108
      %v2152 = vpack.c.bf16 %v2111, %v2110
      %v2153 = vpack.c.bf16 %v2113, %v2112
      %v2154 = vpack.c.bf16 %v2115, %v2114
      %v2155 = vpack.c.bf16 %v2117, %v2116
      %v2156 = vpack.c.bf16 %v2119, %v2118
      %v2157 = vpack.c.bf16 %v2121, %v2120
      %v2158 = vpack.c.bf16 %v2123, %v2122
      %v2159 = vpack.c.bf16 %v2125, %v2124
      %v2160 = vpack.c.bf16 %v2127, %v2126
      %v2161 = vpack.c.bf16 %v2129, %v2128
      %v2162 = vld [vmem:[%s3] sm:$0xf]
      %v2163 = vld [vmem:[%s3 + $0x4] sm:$0xf]
      %v2164 = vld [vmem:[%s3 + $0x8] sm:$0xf]
      %v2165 = vld [vmem:[%s3 + $0xc] sm:$0xf]
      %v2166 = vld [vmem:[%s4] sm:$0x1]
      %v2168 = vlaneseq
      %v2169 = vshrl.u32 %v2168, 7
      %v2170 = vsub.s32 0, %v2169
      %v2171 = vrot.slane %v2166, %v2170
      %v2177 = vunpack.c.l.b16 %v2162
      %v2178 = vunpack.c.l.b16 %v2163
      %v2179 = vunpack.c.l.b16 %v2164
      %v2180 = vunpack.c.l.b16 %v2165
      %v2181 = vpack.c.b16 %v2178, %v2177
      %v2182 = vpack.c.b16 %v2180, %v2179
      %vm2185 = vcmask 261120
      %v2187 = vsel %vm2185, %v2130, 0
      %v2190 = vsel %vm2185, %v2131, 0
      %v2193 = vsel %vm2185, %v2132, 0
      %v2196 = vsel %vm2185, %v2133, 0
      %v2199 = vsel %vm2185, %v2134, 0
      %v2202 = vsel %vm2185, %v2135, 0
      %v2205 = vsel %vm2185, %v2136, 0
      %v2208 = vsel %vm2185, %v2137, 0
      %v2211 = vsel %vm2185, %v2138, 0
      %v2214 = vsel %vm2185, %v2139, 0
      %v2217 = vsel %vm2185, %v2140, 0
      %v2220 = vsel %vm2185, %v2141, 0
      %v2223 = vsel %vm2185, %v2142, 0
      %v2226 = vsel %vm2185, %v2143, 0
      %v2229 = vsel %vm2185, %v2144, 0
      %v2232 = vsel %vm2185, %v2145, 0
      %v2235 = vsel %vm2185, %v2146, 0
      %v2238 = vsel %vm2185, %v2147, 0
      %v2241 = vsel %vm2185, %v2148, 0
      %v2244 = vsel %vm2185, %v2149, 0
      %v2247 = vsel %vm2185, %v2150, 0
      %v2250 = vsel %vm2185, %v2151, 0
      %v2253 = vsel %vm2185, %v2152, 0
      %v2256 = vsel %vm2185, %v2153, 0
      %v2259 = vsel %vm2185, %v2154, 0
      %v2262 = vsel %vm2185, %v2155, 0
      %v2265 = vsel %vm2185, %v2156, 0
      %v2268 = vsel %vm2185, %v2157, 0
      %v2271 = vsel %vm2185, %v2158, 0
      %v2274 = vsel %vm2185, %v2159, 0
      %v2277 = vsel %vm2185, %v2160, 0
      %v2280 = vsel %vm2185, %v2161, 0
      %2282 = vmatprep.subr.bf16.mxu0 0
      %2283 = vmatpush1.bf16.msra.mxu0 0
      %2284 = vmatprep.subr.bf16.mxu0 0
      %2285 = vmatpush1.bf16.msra.mxu0 0
      %2286 = vmatprep.subr.bf16.mxu0 0
      %2287 = vmatpush1.bf16.msra.mxu0 0
      %2288 = vmatprep.subr.bf16.mxu0 0
      %2289 = vmatpush1.bf16.msra.mxu0 0
      %2290 = vmatprep.subr.bf16.mxu0 0
      %2291 = vmatpush1.bf16.msra.mxu0 0
      %2292 = vmatprep.subr.bf16.mxu0 0
      %2293 = vmatpush1.bf16.msra.mxu0 0
      %2294 = vmatprep.subr.bf16.mxu0 0
      %2295 = vmatpush1.bf16.msra.mxu0 %v2182
      %2296 = vmatprep.subr.bf16.mxu0 0
      %2297 = vmatpush1.bf16.msra.mxu0 %v2181
      %2298 = vmatprep.subr.bf16.mxu0 0
      %2299 = vmatpush2.bf16.msra.mxu0 0
      %2300 = vmatprep.subr.bf16.mxu0 0
      %2301 = vmatpush2.bf16.msra.mxu0 0
      %2302 = vmatprep.subr.bf16.mxu0 0
      %2303 = vmatpush2.bf16.msra.mxu0 0
      %2304 = vmatprep.subr.bf16.mxu0 0
      %2305 = vmatpush2.bf16.msra.mxu0 0
      %2306 = vmatprep.subr.bf16.mxu0 0
      %2307 = vmatpush2.bf16.msra.mxu0 0
      %2308 = vmatprep.subr.bf16.mxu0 0
      %2309 = vmatpush2.bf16.msra.mxu0 0
      %2310 = vmatprep.subr.bf16.mxu0 0
      %2311 = vmatpush2.bf16.msra.mxu0 0
      %2312 = vmatprep.subr.bf16.mxu0 0
      %2313 = vmatpush2.bf16.msra.mxu0 0
      %2314 = vmatprep.mubr.bf16.mxu0 0
      %2315 = vmatmul.mubr.bf16.gmra.mxu0 %v2187
      %v2316 = vpop.f32.mrf.mxu0
      %v2317 = vadd.f32 %v2171, %v2316
      %v2318 = vpop.f32.mrf.mxu0
      %v2319 = vpop.f32.mrf.mxu0
      %v2320 = vadd.f32 %v2171, %v2319
      %v2321 = vpop.f32.mrf.mxu0
      %2322 = vmatprep.mubr.bf16.mxu0 0
      %2323 = vmatmul.mubr.bf16.gmra.mxu0 %v2190
      %v2324 = vpop.f32.mrf.mxu0
      %v2325 = vadd.f32 %v2171, %v2324
      %v2326 = vpop.f32.mrf.mxu0
      %v2327 = vpop.f32.mrf.mxu0
      %v2328 = vadd.f32 %v2171, %v2327
      %v2329 = vpop.f32.mrf.mxu0
      %2330 = vmatprep.mubr.bf16.mxu0 0
      %2331 = vmatmul.mubr.bf16.gmra.mxu0 %v2193
      %v2332 = vpop.f32.mrf.mxu0
      %v2333 = vadd.f32 %v2171, %v2332
      %v2334 = vpop.f32.mrf.mxu0
      %v2335 = vpop.f32.mrf.mxu0
      %v2336 = vadd.f32 %v2171, %v2335
      %v2337 = vpop.f32.mrf.mxu0
      %2338 = vmatprep.mubr.bf16.mxu0 0
      %2339 = vmatmul.mubr.bf16.gmra.mxu0 %v2196
      %v2340 = vpop.f32.mrf.mxu0
      %v2341 = vadd.f32 %v2171, %v2340
      %v2342 = vpop.f32.mrf.mxu0
      %v2343 = vpop.f32.mrf.mxu0
      %v2344 = vadd.f32 %v2171, %v2343
      %v2345 = vpop.f32.mrf.mxu0
      %2346 = vmatprep.mubr.bf16.mxu0 0
      %2347 = vmatmul.mubr.bf16.gmra.mxu0 %v2199
      %v2348 = vpop.f32.mrf.mxu0
      %v2349 = vadd.f32 %v2171, %v2348
      %v2350 = vpop.f32.mrf.mxu0
      %v2351 = vpop.f32.mrf.mxu0
      %v2352 = vadd.f32 %v2171, %v2351
      %v2353 = vpop.f32.mrf.mxu0
      %2354 = vmatprep.mubr.bf16.mxu0 0
      %2355 = vmatmul.mubr.bf16.gmra.mxu0 %v2202
      %v2356 = vpop.f32.mrf.mxu0
      %v2357 = vadd.f32 %v2171, %v2356
      %v2358 = vpop.f32.mrf.mxu0
      %v2359 = vpop.f32.mrf.mxu0
      %v2360 = vadd.f32 %v2171, %v2359
      %v2361 = vpop.f32.mrf.mxu0
      %2362 = vmatprep.mubr.bf16.mxu0 0
      %2363 = vmatmul.mubr.bf16.gmra.mxu0 %v2205
      %v2364 = vpop.f32.mrf.mxu0
      %v2365 = vadd.f32 %v2171, %v2364
      %v2366 = vpop.f32.mrf.mxu0
      %v2367 = vpop.f32.mrf.mxu0
      %v2368 = vadd.f32 %v2171, %v2367
      %v2369 = vpop.f32.mrf.mxu0
      %2370 = vmatprep.mubr.bf16.mxu0 0
      %2371 = vmatmul.mubr.bf16.gmra.mxu0 %v2208
      %v2372 = vpop.f32.mrf.mxu0
      %v2373 = vadd.f32 %v2171, %v2372
      %v2374 = vpop.f32.mrf.mxu0
      %v2375 = vpop.f32.mrf.mxu0
      %v2376 = vadd.f32 %v2171, %v2375
      %v2377 = vpop.f32.mrf.mxu0
      %2378 = vmatprep.mubr.bf16.mxu0 0
      %2379 = vmatmul.mubr.bf16.gmra.mxu0 %v2211
      %v2380 = vpop.f32.mrf.mxu0
      %v2381 = vadd.f32 %v2171, %v2380
      %v2382 = vpop.f32.mrf.mxu0
      %v2383 = vpop.f32.mrf.mxu0
      %v2384 = vadd.f32 %v2171, %v2383
      %v2385 = vpop.f32.mrf.mxu0
      %2386 = vmatprep.mubr.bf16.mxu0 0
      %2387 = vmatmul.mubr.bf16.gmra.mxu0 %v2214
      %v2388 = vpop.f32.mrf.mxu0
      %v2389 = vadd.f32 %v2171, %v2388
      %v2390 = vpop.f32.mrf.mxu0
      %v2391 = vpop.f32.mrf.mxu0
      %v2392 = vadd.f32 %v2171, %v2391
      %v2393 = vpop.f32.mrf.mxu0
      %2394 = vmatprep.mubr.bf16.mxu0 0
      %2395 = vmatmul.mubr.bf16.gmra.mxu0 %v2217
      %v2396 = vpop.f32.mrf.mxu0
      %v2397 = vadd.f32 %v2171, %v2396
      %v2398 = vpop.f32.mrf.mxu0
      %v2399 = vpop.f32.mrf.mxu0
      %v2400 = vadd.f32 %v2171, %v2399
      %v2401 = vpop.f32.mrf.mxu0
      %2402 = vmatprep.mubr.bf16.mxu0 0
      %2403 = vmatmul.mubr.bf16.gmra.mxu0 %v2220
      %v2404 = vpop.f32.mrf.mxu0
      %v2405 = vadd.f32 %v2171, %v2404
      %v2406 = vpop.f32.mrf.mxu0
      %v2407 = vpop.f32.mrf.mxu0
      %v2408 = vadd.f32 %v2171, %v2407
      %v2409 = vpop.f32.mrf.mxu0
      %2410 = vmatprep.mubr.bf16.mxu0 0
      %2411 = vmatmul.mubr.bf16.gmra.mxu0 %v2223
      %v2412 = vpop.f32.mrf.mxu0
      %v2413 = vadd.f32 %v2171, %v2412
      %v2414 = vpop.f32.mrf.mxu0
      %v2415 = vpop.f32.mrf.mxu0
      %v2416 = vadd.f32 %v2171, %v2415
      %v2417 = vpop.f32.mrf.mxu0
      %2418 = vmatprep.mubr.bf16.mxu0 0
      %2419 = vmatmul.mubr.bf16.gmra.mxu0 %v2226
      %v2420 = vpop.f32.mrf.mxu0
      %v2421 = vadd.f32 %v2171, %v2420
      %v2422 = vpop.f32.mrf.mxu0
      %v2423 = vpop.f32.mrf.mxu0
      %v2424 = vadd.f32 %v2171, %v2423
      %v2425 = vpop.f32.mrf.mxu0
      %2426 = vmatprep.mubr.bf16.mxu0 0
      %2427 = vmatmul.mubr.bf16.gmra.mxu0 %v2229
      %v2428 = vpop.f32.mrf.mxu0
      %v2429 = vadd.f32 %v2171, %v2428
      %v2430 = vpop.f32.mrf.mxu0
      %v2431 = vpop.f32.mrf.mxu0
      %v2432 = vadd.f32 %v2171, %v2431
      %v2433 = vpop.f32.mrf.mxu0
      %2434 = vmatprep.mubr.bf16.mxu0 0
      %2435 = vmatmul.mubr.bf16.gmra.mxu0 %v2232
      %v2436 = vpop.f32.mrf.mxu0
      %v2437 = vadd.f32 %v2171, %v2436
      %v2438 = vpop.f32.mrf.mxu0
      %v2439 = vpop.f32.mrf.mxu0
      %v2440 = vadd.f32 %v2171, %v2439
      %v2441 = vpop.f32.mrf.mxu0
      %2442 = vmatprep.mubr.bf16.mxu0 0
      %2443 = vmatmul.mubr.bf16.gmra.mxu0 %v2235
      %v2444 = vpop.f32.mrf.mxu0
      %v2445 = vadd.f32 %v2171, %v2444
      %v2446 = vpop.f32.mrf.mxu0
      %v2447 = vpop.f32.mrf.mxu0
      %v2448 = vadd.f32 %v2171, %v2447
      %v2449 = vpop.f32.mrf.mxu0
      %2450 = vmatprep.mubr.bf16.mxu0 0
      %2451 = vmatmul.mubr.bf16.gmra.mxu0 %v2238
      %v2452 = vpop.f32.mrf.mxu0
      %v2453 = vadd.f32 %v2171, %v2452
      %v2454 = vpop.f32.mrf.mxu0
      %v2455 = vpop.f32.mrf.mxu0
      %v2456 = vadd.f32 %v2171, %v2455
      %v2457 = vpop.f32.mrf.mxu0
      %2458 = vmatprep.mubr.bf16.mxu0 0
      %2459 = vmatmul.mubr.bf16.gmra.mxu0 %v2241
      %v2460 = vpop.f32.mrf.mxu0
      %v2461 = vadd.f32 %v2171, %v2460
      %v2462 = vpop.f32.mrf.mxu0
      %v2463 = vpop.f32.mrf.mxu0
      %v2464 = vadd.f32 %v2171, %v2463
      %v2465 = vpop.f32.mrf.mxu0
      %2466 = vmatprep.mubr.bf16.mxu0 0
      %2467 = vmatmul.mubr.bf16.gmra.mxu0 %v2244
      %v2468 = vpop.f32.mrf.mxu0
      %v2469 = vadd.f32 %v2171, %v2468
      %v2470 = vpop.f32.mrf.mxu0
      %v2471 = vpop.f32.mrf.mxu0
      %v2472 = vadd.f32 %v2171, %v2471
      %v2473 = vpop.f32.mrf.mxu0
      %2474 = vmatprep.mubr.bf16.mxu0 0
      %2475 = vmatmul.mubr.bf16.gmra.mxu0 %v2247
      %v2476 = vpop.f32.mrf.mxu0
      %v2477 = vadd.f32 %v2171, %v2476
      %v2478 = vpop.f32.mrf.mxu0
      %v2479 = vpop.f32.mrf.mxu0
      %v2480 = vadd.f32 %v2171, %v2479
      %v2481 = vpop.f32.mrf.mxu0
      %2482 = vmatprep.mubr.bf16.mxu0 0
      %2483 = vmatmul.mubr.bf16.gmra.mxu0 %v2250
      %v2484 = vpop.f32.mrf.mxu0
      %v2485 = vadd.f32 %v2171, %v2484
      %v2486 = vpop.f32.mrf.mxu0
      %v2487 = vpop.f32.mrf.mxu0
      %v2488 = vadd.f32 %v2171, %v2487
      %v2489 = vpop.f32.mrf.mxu0
      %2490 = vmatprep.mubr.bf16.mxu0 0
      %2491 = vmatmul.mubr.bf16.gmra.mxu0 %v2253
      %v2492 = vpop.f32.mrf.mxu0
      %v2493 = vadd.f32 %v2171, %v2492
      %v2494 = vpop.f32.mrf.mxu0
      %v2495 = vpop.f32.mrf.mxu0
      %v2496 = vadd.f32 %v2171, %v2495
      %v2497 = vpop.f32.mrf.mxu0
      %2498 = vmatprep.mubr.bf16.mxu0 0
      %2499 = vmatmul.mubr.bf16.gmra.mxu0 %v2256
      %v2500 = vpop.f32.mrf.mxu0
      %v2501 = vadd.f32 %v2171, %v2500
      %v2502 = vpop.f32.mrf.mxu0
      %v2503 = vpop.f32.mrf.mxu0
      %v2504 = vadd.f32 %v2171, %v2503
      %v2505 = vpop.f32.mrf.mxu0
      %2506 = vmatprep.mubr.bf16.mxu0 0
      %2507 = vmatmul.mubr.bf16.gmra.mxu0 %v2259
      %v2508 = vpop.f32.mrf.mxu0
      %v2509 = vadd.f32 %v2171, %v2508
      %v2510 = vpop.f32.mrf.mxu0
      %v2511 = vpop.f32.mrf.mxu0
      %v2512 = vadd.f32 %v2171, %v2511
      %v2513 = vpop.f32.mrf.mxu0
      %2514 = vmatprep.mubr.bf16.mxu0 0
      %2515 = vmatmul.mubr.bf16.gmra.mxu0 %v2262
      %v2516 = vpop.f32.mrf.mxu0
      %v2517 = vadd.f32 %v2171, %v2516
      %v2518 = vpop.f32.mrf.mxu0
      %v2519 = vpop.f32.mrf.mxu0
      %v2520 = vadd.f32 %v2171, %v2519
      %v2521 = vpop.f32.mrf.mxu0
      %2522 = vmatprep.mubr.bf16.mxu0 0
      %2523 = vmatmul.mubr.bf16.gmra.mxu0 %v2265
      %v2524 = vpop.f32.mrf.mxu0
      %v2525 = vadd.f32 %v2171, %v2524
      %v2526 = vpop.f32.mrf.mxu0
      %v2527 = vpop.f32.mrf.mxu0
      %v2528 = vadd.f32 %v2171, %v2527
      %v2529 = vpop.f32.mrf.mxu0
      %2530 = vmatprep.mubr.bf16.mxu0 0
      %2531 = vmatmul.mubr.bf16.gmra.mxu0 %v2268
      %v2532 = vpop.f32.mrf.mxu0
      %v2533 = vadd.f32 %v2171, %v2532
      %v2534 = vpop.f32.mrf.mxu0
      %v2535 = vpop.f32.mrf.mxu0
      %v2536 = vadd.f32 %v2171, %v2535
      %v2537 = vpop.f32.mrf.mxu0
      %2538 = vmatprep.mubr.bf16.mxu0 0
      %2539 = vmatmul.mubr.bf16.gmra.mxu0 %v2271
      %v2540 = vpop.f32.mrf.mxu0
      %v2541 = vadd.f32 %v2171, %v2540
      %v2542 = vpop.f32.mrf.mxu0
      %v2543 = vpop.f32.mrf.mxu0
      %v2544 = vadd.f32 %v2171, %v2543
      %v2545 = vpop.f32.mrf.mxu0
      %2546 = vmatprep.mubr.bf16.mxu0 0
      %2547 = vmatmul.mubr.bf16.gmra.mxu0 %v2274
      %v2548 = vpop.f32.mrf.mxu0
      %v2549 = vadd.f32 %v2171, %v2548
      %v2550 = vpop.f32.mrf.mxu0
      %v2551 = vpop.f32.mrf.mxu0
      %v2552 = vadd.f32 %v2171, %v2551
      %v2553 = vpop.f32.mrf.mxu0
      %2554 = vmatprep.mubr.bf16.mxu0 0
      %2555 = vmatmul.mubr.bf16.gmra.mxu0 %v2277
      %v2556 = vpop.f32.mrf.mxu0
      %v2557 = vadd.f32 %v2171, %v2556
      %v2558 = vpop.f32.mrf.mxu0
      %v2559 = vpop.f32.mrf.mxu0
      %v2560 = vadd.f32 %v2171, %v2559
      %v2561 = vpop.f32.mrf.mxu0
      %2562 = vmatprep.mubr.bf16.mxu0 0
      %2563 = vmatmul.mubr.bf16.gmra.mxu0 %v2280
      %v2564 = vpop.f32.mrf.mxu0
      %v2565 = vadd.f32 %v2171, %v2564
      %v2566 = vpop.f32.mrf.mxu0
      %v2567 = vpop.f32.mrf.mxu0
      %v2568 = vadd.f32 %v2171, %v2567
      %v2569 = vpop.f32.mrf.mxu0
      %2570 = vdwg.mxu0
      %vm2571 = vcmask 64512
      %2572 = vst.msk [vmem:[%s248] sm:$0xff] %vm2571, %v2317
      %2573 = vst.msk [vmem:[%s248 + $0x8] sm:$0xff] %vm2571, %v2320
      %2574 = vst.msk [vmem:[%s248 + $0x10] sm:$0xff] %vm2571, %v2325
      %2575 = vst.msk [vmem:[%s248 + $0x18] sm:$0xff] %vm2571, %v2328
      %2576 = vst.msk [vmem:[%s248 + $0x20] sm:$0xff] %vm2571, %v2333
      %2577 = vst.msk [vmem:[%s248 + $0x28] sm:$0xff] %vm2571, %v2336
      %2578 = vst.msk [vmem:[%s248 + $0x30] sm:$0xff] %vm2571, %v2341
      %2579 = vst.msk [vmem:[%s248 + $0x38] sm:$0xff] %vm2571, %v2344
      %2580 = vst.msk [vmem:[%s248 + $0x40] sm:$0xff] %vm2571, %v2349
      %2581 = vst.msk [vmem:[%s248 + $0x48] sm:$0xff] %vm2571, %v2352
      %2582 = vst.msk [vmem:[%s248 + $0x50] sm:$0xff] %vm2571, %v2357
      %2583 = vst.msk [vmem:[%s248 + $0x58] sm:$0xff] %vm2571, %v2360
      %2584 = vst.msk [vmem:[%s248 + $0x60] sm:$0xff] %vm2571, %v2365
      %2585 = vst.msk [vmem:[%s248 + $0x68] sm:$0xff] %vm2571, %v2368
      %2586 = vst.msk [vmem:[%s248 + $0x70] sm:$0xff] %vm2571, %v2373
      %2587 = vst.msk [vmem:[%s248 + $0x78] sm:$0xff] %vm2571, %v2376
      %2588 = vst.msk [vmem:[%s248 + $0x80] sm:$0xff] %vm2571, %v2381
      %2589 = vst.msk [vmem:[%s248 + $0x88] sm:$0xff] %vm2571, %v2384
      %2590 = vst.msk [vmem:[%s248 + $0x90] sm:$0xff] %vm2571, %v2389
      %2591 = vst.msk [vmem:[%s248 + $0x98] sm:$0xff] %vm2571, %v2392
      %2592 = vst.msk [vmem:[%s248 + $0xa0] sm:$0xff] %vm2571, %v2397
      %2593 = vst.msk [vmem:[%s248 + $0xa8] sm:$0xff] %vm2571, %v2400
      %2594 = vst.msk [vmem:[%s248 + $0xb0] sm:$0xff] %vm2571, %v2405
      %2595 = vst.msk [vmem:[%s248 + $0xb8] sm:$0xff] %vm2571, %v2408
      %2596 = vst.msk [vmem:[%s248 + $0xc0] sm:$0xff] %vm2571, %v2413
      %2597 = vst.msk [vmem:[%s248 + $0xc8] sm:$0xff] %vm2571, %v2416
      %2598 = vst.msk [vmem:[%s248 + $0xd0] sm:$0xff] %vm2571, %v2421
      %2599 = vst.msk [vmem:[%s248 + $0xd8] sm:$0xff] %vm2571, %v2424
      %2600 = vst.msk [vmem:[%s248 + $0xe0] sm:$0xff] %vm2571, %v2429
      %2601 = vst.msk [vmem:[%s248 + $0xe8] sm:$0xff] %vm2571, %v2432
      %2602 = vst.msk [vmem:[%s248 + $0xf0] sm:$0xff] %vm2571, %v2437
      %2603 = vst.msk [vmem:[%s248 + $0xf8] sm:$0xff] %vm2571, %v2440
      %2604 = vst.msk [vmem:[%s248 + $0x100] sm:$0xff] %vm2571, %v2445
      %2605 = vst.msk [vmem:[%s248 + $0x108] sm:$0xff] %vm2571, %v2448
      %2606 = vst.msk [vmem:[%s248 + $0x110] sm:$0xff] %vm2571, %v2453
      %2607 = vst.msk [vmem:[%s248 + $0x118] sm:$0xff] %vm2571, %v2456
      %2608 = vst.msk [vmem:[%s248 + $0x120] sm:$0xff] %vm2571, %v2461
      %2609 = vst.msk [vmem:[%s248 + $0x128] sm:$0xff] %vm2571, %v2464
      %2610 = vst.msk [vmem:[%s248 + $0x130] sm:$0xff] %vm2571, %v2469
      %2611 = vst.msk [vmem:[%s248 + $0x138] sm:$0xff] %vm2571, %v2472
      %2612 = vst.msk [vmem:[%s248 + $0x140] sm:$0xff] %vm2571, %v2477
      %2613 = vst.msk [vmem:[%s248 + $0x148] sm:$0xff] %vm2571, %v2480
      %2614 = vst.msk [vmem:[%s248 + $0x150] sm:$0xff] %vm2571, %v2485
      %2615 = vst.msk [vmem:[%s248 + $0x158] sm:$0xff] %vm2571, %v2488
      %2616 = vst.msk [vmem:[%s248 + $0x160] sm:$0xff] %vm2571, %v2493
      %2617 = vst.msk [vmem:[%s248 + $0x168] sm:$0xff] %vm2571, %v2496
      %2618 = vst.msk [vmem:[%s248 + $0x170] sm:$0xff] %vm2571, %v2501
      %2619 = vst.msk [vmem:[%s248 + $0x178] sm:$0xff] %vm2571, %v2504
      %2620 = vst.msk [vmem:[%s248 + $0x180] sm:$0xff] %vm2571, %v2509
      %2621 = vst.msk [vmem:[%s248 + $0x188] sm:$0xff] %vm2571, %v2512
      %2622 = vst.msk [vmem:[%s248 + $0x190] sm:$0xff] %vm2571, %v2517
      %2623 = vst.msk [vmem:[%s248 + $0x198] sm:$0xff] %vm2571, %v2520
      %2624 = vst.msk [vmem:[%s248 + $0x1a0] sm:$0xff] %vm2571, %v2525
      %2625 = vst.msk [vmem:[%s248 + $0x1a8] sm:$0xff] %vm2571, %v2528
      %2626 = vst.msk [vmem:[%s248 + $0x1b0] sm:$0xff] %vm2571, %v2533
      %2627 = vst.msk [vmem:[%s248 + $0x1b8] sm:$0xff] %vm2571, %v2536
      %2628 = vst.msk [vmem:[%s248 + $0x1c0] sm:$0xff] %vm2571, %v2541
      %2629 = vst.msk [vmem:[%s248 + $0x1c8] sm:$0xff] %vm2571, %v2544
      %2630 = vst.msk [vmem:[%s248 + $0x1d0] sm:$0xff] %vm2571, %v2549
      %2631 = vst.msk [vmem:[%s248 + $0x1d8] sm:$0xff] %vm2571, %v2552
      %2632 = vst.msk [vmem:[%s248 + $0x1e0] sm:$0xff] %vm2571, %v2557
      %2633 = vst.msk [vmem:[%s248 + $0x1e8] sm:$0xff] %vm2571, %v2560
      %2634 = vst.msk [vmem:[%s248 + $0x1f0] sm:$0xff] %vm2571, %v2565
      %2635 = vst.msk [vmem:[%s248 + $0x1f8] sm:$0xff] %vm2571, %v2568
      %s2636 = smul.u32 16, %s21
      %p2637 = scmp.lt.s32.totalorder %s20, 1
      %s2638 = scalar_select %p2637, %s20, 1
      %p2639 = scmp.lt.s32.totalorder %s2636, 31
      %s2640 = scalar_select %p2639, %s2636, 31
      %s2641 = smul.addr %s2640, 4
      %s2642 = smul.addr %s2638, 128
      %s2643 = sadd.s32 %s2641, %s2642
      %s2644 = smul.addr %s2643, 8
      %s2645 = scalar_lea.vmem %s5, %s2644
      // Predicated region
      $region41: #{dilated_dwsep_conv.1} parent=39 // pred_check
        %p2646 = pneg %p158
      $region42: #{dilated_dwsep_conv.1} parent=39 // pred_check_branch
        %2648 = sbr.rel (%p2646) target = $region44
      $region43: #{dilated_dwsep_conv.1} parent=39 // pred_region
        %s2649 = smul.u32 16, %s21
      $region44: #{dilated_dwsep_conv.1} parent=39 // pred_fallthru
        _
    $region40: #{dilated_dwsep_conv.1} parent=5 // pred_fallthru
      _
    %p2650 = scmp.le.s32.totalorder 2, %s11
    // Predicated region
    $region45: #{dilated_dwsep_conv.1} parent=5 // pred_check
      %p2651 = pneg %p2650
    $region46: #{dilated_dwsep_conv.1} parent=5 // pred_check_branch
      %2653 = sbr.rel (%p2651) target = $region48
    $region47: #{dilated_dwsep_conv.1} parent=5 // pred_region
      %s2654 = ssub.s32 %s11, 2
      // Predicated region
      $region49: #{dilated_dwsep_conv.1} parent=47 // pred_check
        %p2655 = pneg %p164
      $region50: #{dilated_dwsep_conv.1} parent=47 // pred_check_branch
        %2657 = sbr.rel (%p2655) target = $region52
      $region51: #{dilated_dwsep_conv.1} parent=47 // pred_region
        %s2658 = smul.u32 16, %s23
        %p2659 = scmp.lt.s32.totalorder %s22, 1
        %s2660 = scalar_select %p2659, %s22, 1
        %p2661 = scmp.lt.s32.totalorder %s2658, 31
        %s2662 = scalar_select %p2661, %s2658, 31
        %s2663 = smul.addr %s2662, 4
        %s2664 = smul.addr %s2660, 128
        %s2665 = sadd.s32 %s2663, %s2664
        %s2666 = smul.addr %s2665, 8
        %s2667 = scalar_lea.vmem %s5, %s2666
      $region52: #{dilated_dwsep_conv.1} parent=47 // pred_fallthru
        _
    $region48: #{dilated_dwsep_conv.1} parent=5 // pred_fallthru
      _
  $region6: #{dilated_dwsep_conv.1} parent=0 // loop_footer
    %s15 = sadd.s32 1, %s11
  $region7: #{dilated_dwsep_conv.1} parent=0 // loop_footer_branch
    %10 = sbr.rel target = $region3
  $region8: #{dilated_dwsep_conv.1} parent=0 // loop_exit
    _

</llo_original>
